<compile_context>
chip_gen: v7x
topology: tpu7x:2x2x1
jax: 0.10.0
libtpu: 0.0.40
codegen_flags: <defaults>
</compile_context>

<pallas_src>
import jax
import jax.numpy as jnp
from jax.experimental import pallas as pl
from jax.experimental.pallas import tpu as pltpu

HIDDEN = [128, 256, 128]
KERNELS = [7, 5, 3]
IN_CH = 2


def _round_up(n, m):
    return -(-n // m) * m


def _roll_len(h, shift):
    """Circular shift along the length axis (axis=1): out[:, i] = h[:, (i - shift) % L]."""
    L = h.shape[1]
    s = shift % L
    if s == 0:
        return h
    return jnp.concatenate([h[:, L - s:, :], h[:, :L - s, :]], axis=1)


def _circular_conv_fused(h, w_flat, b, K):
    """Circular-'same' Conv1d + bias + ReLU as ONE im2col matmul.

    h:      (B, L, Cin)   activations (bf16), Cin a multiple of 128
    w_flat: (K*Cin, Cout) weights; row (k*Cin + c) == torch weight[:, c, k]
    b:      (1, Cout)     bias (f32)
    """
    B, L, Cin = h.shape
    Cout = w_flat.shape[1]
    p = (K - 1) // 2
    # out[:, l] needs h[:, (l + k - p) % L] for tap k  ->  shift by (p - k).
    taps = [_roll_len(h, p - k) for k in range(K)]
    col = jnp.concatenate(taps, axis=-1).reshape(B * L, K * Cin)
    acc = jnp.dot(col, w_flat, preferred_element_type=jnp.float32)
    acc = jnp.maximum(acc + b, 0.0)                       # bias + ReLU in f32
    return acc.reshape(B, L, Cout)


def fcn_kernel(xcol_ref, w1_ref, b1_ref, w2_ref, b2_ref, w3_ref, b3_ref,
               wl_ref, bl_ref, out_ref):
    B, L, KC1 = xcol_ref.shape

    # Layer 1 (2 -> 128): im2col prebuilt in wrapper -> one (B*L,14)@(14,128).
    col1 = xcol_ref[...].reshape(B * L, KC1)
    h = jnp.dot(col1, w1_ref[...], preferred_element_type=jnp.float32)
    h = jnp.maximum(h + b1_ref[...], 0.0).reshape(B, L, HIDDEN[0])

    # Layers 2 (128 -> 256) and 3 (256 -> 128): bf16 operands, f32 accumulate.
    h = _circular_conv_fused(h.astype(jnp.bfloat16), w2_ref[...], b2_ref[...],
                             KERNELS[1])
    h = _circular_conv_fused(h.astype(jnp.bfloat16), w3_ref[...], b3_ref[...],
                             KERNELS[2])

    # Global average pool over length, then Linear(128 -> 1) + Sigmoid.
    pooled = jnp.mean(h, axis=1)                          # (B, 128) f32
    # (1, 128) @ (128, B): head result lands lane-dense as a (1, B) row.
    row = jnp.dot(wl_ref[...], pooled.T, preferred_element_type=jnp.float32)
    out_ref[...] = jax.nn.sigmoid(row + bl_ref[...]).reshape(1, 1, B)


def init_params(key):
    ks = jax.random.split(key, 8)
    dims = [IN_CH] + HIDDEN
    params = []
    for i in range(3):
        cin, cout, K = dims[i], dims[i + 1], KERNELS[i]
        # (K, Cin, Cout) == torch weight (Cout, Cin, K) transposed, flattened
        # to (K*Cin, Cout) for the fused im2col matmul.
        w = jax.random.normal(ks[2 * i], (K, cin, cout), jnp.float32) * 0.1
        w = w.reshape(K * cin, cout)
        if i > 0:                                # layers 2/3: bf16 MXU path
            w = w.astype(jnp.bfloat16)
        b = jax.random.normal(ks[2 * i + 1], (1, cout), jnp.float32) * 0.1
        params += [w, b]
    # Linear head stored transposed, (1, C3), so its matmul output is lane-dense.
    wl = jax.random.normal(ks[6], (1, HIDDEN[2]), jnp.float32) * 0.1
    bl = jax.random.normal(ks[7], (1, 1), jnp.float32) * 0.1
    params += [wl, bl]
    return params


def _pick_batch_tile(n, seq_len):
    # Keep B_TILE * L rows of (<=640-wide bf16 / <=256-wide f32) intermediates
    # well inside a 32 MiB scoped-VMEM budget (safe on v5e / v6e / v7x).
    rows_budget = 4096
    bt = (rows_budget // max(seq_len, 1)) // 8 * 8
    bt = max(8, min(512, bt))
    return min(bt, _round_up(n, 8))


def circular_fcn_forward(x, params):
    w1, b1, w2, b2, w3, b3, wl, bl = params
    n = x.shape[0]
    seq = x.shape[-1]
    k1 = KERNELS[0]
    p1 = (k1 - 1) // 2

    # torch.flatten(x, 1, 2) + cast: (N, 2, 1, L) -> (N, 2, L) float32.
    x2 = x.reshape(n, x.shape[1] * x.shape[2], seq).astype(jnp.float32)

    # Layer-1 im2col built XLA-side (fused with the NCL->NLC transpose):
    #   xcol[n, l, k*Cin + c] = x[n, c, (l + k - p) % L]   -> (N, L, K1*Cin)
    taps = [jnp.roll(x2, shift=p1 - k, axis=2) for k in range(k1)]
    xcol = jnp.stack(taps, axis=1)                        # (N, K1, Cin, L)
    xcol = jnp.transpose(xcol, (0, 3, 1, 2)).reshape(n, seq, k1 * IN_CH)

    bt = _pick_batch_tile(n, seq)
    g = -(-n // bt)
    n_pad = g * bt
    if n_pad != n:
        xcol = jnp.pad(xcol, ((0, n_pad - n), (0, 0), (0, 0)))

    full = lambda a: pl.BlockSpec(a.shape, lambda i: (0,) * a.ndim)

    out = pl.pallas_call(
        fcn_kernel,
        out_shape=jax.ShapeDtypeStruct((g, 1, bt), jnp.float32),
        grid=(g,),
        in_specs=[
            pl.BlockSpec((bt, seq, k1 * IN_CH), lambda i: (i, 0, 0)),
            full(w1), full(b1), full(w2), full(b2), full(w3), full(b3),
            full(wl), full(bl),
        ],
        out_specs=pl.BlockSpec((1, 1, bt), lambda i: (i, 0, 0)),
        compiler_params=pltpu.CompilerParams(
            dimension_semantics=("parallel",),
            vmem_limit_bytes=32 * 1024 * 1024),
    )(xcol, w1, b1, w2, b2, w3, b3, wl, bl)

    return out.reshape(n_pad)[:n]            # == torch.flatten(sigmoid(...))


if __name__ == "__main__":
    key = jax.random.PRNGKey(0)
    k_params, k_x = jax.random.split(key)
    params = init_params(k_params)

    # Small input consistent with forward(): (batch=2, 2, 1, seq=16).
    x = jax.random.normal(k_x, (2, IN_CH, 1, 16), jnp.float32)

    y = jax.jit(circular_fcn_forward)(x, params)
    jax.block_until_ready(y)
    assert y.shape == (2,)
    print("KERNEL_OK")
</pallas_src>

<mosaic_0001>
module attributes {stable_mosaic.version = 11 : i64} {
  func.func @fcn_kernel(%arg0: i32, %arg1: memref<8x16x14xf32, #tpu.memory_space<vmem>>, %arg2: memref<14x128xf32, #tpu.memory_space<vmem>>, %arg3: memref<1x128xf32, #tpu.memory_space<vmem>>, %arg4: memref<640x256xbf16, #tpu.memory_space<vmem>>, %arg5: memref<1x256xf32, #tpu.memory_space<vmem>>, %arg6: memref<768x128xbf16, #tpu.memory_space<vmem>>, %arg7: memref<1x128xf32, #tpu.memory_space<vmem>>, %arg8: memref<1x128xf32, #tpu.memory_space<vmem>>, %arg9: memref<1x1xf32, #tpu.memory_space<vmem>>, %arg10: memref<1x1x8xf32, #tpu.memory_space<vmem>>) attributes {dimension_semantics = [#tpu.dimension_semantics<parallel>], iteration_bounds = array<i64: 1>, scalar_prefetch = 0 : i64, scratch_operands = 0 : i64, tpu.core_type = #tpu.core_type<tc>, window_params = [{transform_indices = @transform_0, window_bounds = array<i64: 8, 16, 14>}, {pipeline_mode = #tpu.pipeline_mode<synchronous>, transform_indices = @transform_1, window_bounds = array<i64: 14, 128>}, {pipeline_mode = #tpu.pipeline_mode<synchronous>, transform_indices = @transform_2, window_bounds = array<i64: 1, 128>}, {pipeline_mode = #tpu.pipeline_mode<synchronous>, transform_indices = @transform_3, window_bounds = array<i64: 640, 256>}, {pipeline_mode = #tpu.pipeline_mode<synchronous>, transform_indices = @transform_4, window_bounds = array<i64: 1, 256>}, {pipeline_mode = #tpu.pipeline_mode<synchronous>, transform_indices = @transform_5, window_bounds = array<i64: 768, 128>}, {pipeline_mode = #tpu.pipeline_mode<synchronous>, transform_indices = @transform_6, window_bounds = array<i64: 1, 128>}, {pipeline_mode = #tpu.pipeline_mode<synchronous>, transform_indices = @transform_7, window_bounds = array<i64: 1, 128>}, {pipeline_mode = #tpu.pipeline_mode<synchronous>, transform_indices = @transform_8, window_bounds = array<i64: 1, 1>}, {transform_indices = @transform_9, window_bounds = array<i64: 1, 1, 8>}]} {
    %c0 = arith.constant 0 : index
    %c0_0 = arith.constant 0 : index
    %c0_1 = arith.constant 0 : index
    %0 = vector.load %arg1[%c0, %c0_0, %c0_1] : memref<8x16x14xf32, #tpu.memory_space<vmem>>, vector<8x16x14xf32>
    %1 = vector.shape_cast %0 : vector<8x16x14xf32> to vector<128x14xf32>
    %c0_2 = arith.constant 0 : index
    %c0_3 = arith.constant 0 : index
    %2 = vector.load %arg2[%c0_2, %c0_3] : memref<14x128xf32, #tpu.memory_space<vmem>>, vector<14x128xf32>
    %cst = arith.constant dense<0.000000e+00> : vector<128x128xf32>
    %3 = tpu.matmul %1, %2, %cst {dimension_numbers = #tpu.dot_dimension_numbers<[1], [0], [0], [1], [0, 0, 1, 1], [], []>} : vector<128x14xf32>, vector<14x128xf32>, vector<128x128xf32> -> vector<128x128xf32>
    %c0_4 = arith.constant 0 : index
    %c0_5 = arith.constant 0 : index
    %4 = vector.load %arg3[%c0_4, %c0_5] : memref<1x128xf32, #tpu.memory_space<vmem>>, vector<1x128xf32>
    %5 = vector.broadcast %4 : vector<1x128xf32> to vector<128x128xf32>
    %6 = arith.addf %3, %5 : vector<128x128xf32>
    %cst_6 = arith.constant 0.000000e+00 : f32
    %7 = vector.broadcast %cst_6 : f32 to vector<128x128xf32>
    %8 = arith.maximumf %6, %7 : vector<128x128xf32>
    %9 = vector.shape_cast %8 : vector<128x128xf32> to vector<8x16x128xf32>
    %10 = arith.truncf %9 : vector<8x16x128xf32> to vector<8x16x128xbf16>
    %c0_7 = arith.constant 0 : index
    %c0_8 = arith.constant 0 : index
    %11 = vector.load %arg4[%c0_7, %c0_8] : memref<640x256xbf16, #tpu.memory_space<vmem>>, vector<640x256xbf16>
    %c0_9 = arith.constant 0 : index
    %c0_10 = arith.constant 0 : index
    %12 = vector.load %arg5[%c0_9, %c0_10] : memref<1x256xf32, #tpu.memory_space<vmem>>, vector<1x256xf32>
    %13 = vector.extract_strided_slice %10 {offsets = [0, 14, 0], sizes = [8, 2, 128], strides = [1, 1, 1]} : vector<8x16x128xbf16> to vector<8x2x128xbf16>
    %14 = vector.extract_strided_slice %10 {offsets = [0, 0, 0], sizes = [8, 14, 128], strides = [1, 1, 1]} : vector<8x16x128xbf16> to vector<8x14x128xbf16>
    %15 = tpu.concatenate %13, %14 in 1 : vector<8x2x128xbf16>, vector<8x14x128xbf16> -> vector<8x16x128xbf16>
    %16 = vector.extract_strided_slice %10 {offsets = [0, 15, 0], sizes = [8, 1, 128], strides = [1, 1, 1]} : vector<8x16x128xbf16> to vector<8x1x128xbf16>
    %17 = vector.extract_strided_slice %10 {offsets = [0, 0, 0], sizes = [8, 15, 128], strides = [1, 1, 1]} : vector<8x16x128xbf16> to vector<8x15x128xbf16>
    %18 = tpu.concatenate %16, %17 in 1 : vector<8x1x128xbf16>, vector<8x15x128xbf16> -> vector<8x16x128xbf16>
    %19 = vector.extract_strided_slice %10 {offsets = [0, 1, 0], sizes = [8, 15, 128], strides = [1, 1, 1]} : vector<8x16x128xbf16> to vector<8x15x128xbf16>
    %20 = vector.extract_strided_slice %10 {offsets = [0, 0, 0], sizes = [8, 1, 128], strides = [1, 1, 1]} : vector<8x16x128xbf16> to vector<8x1x128xbf16>
    %21 = tpu.concatenate %19, %20 in 1 : vector<8x15x128xbf16>, vector<8x1x128xbf16> -> vector<8x16x128xbf16>
    %22 = vector.extract_strided_slice %10 {offsets = [0, 2, 0], sizes = [8, 14, 128], strides = [1, 1, 1]} : vector<8x16x128xbf16> to vector<8x14x128xbf16>
    %23 = vector.extract_strided_slice %10 {offsets = [0, 0, 0], sizes = [8, 2, 128], strides = [1, 1, 1]} : vector<8x16x128xbf16> to vector<8x2x128xbf16>
    %24 = tpu.concatenate %22, %23 in 1 : vector<8x14x128xbf16>, vector<8x2x128xbf16> -> vector<8x16x128xbf16>
    %25 = tpu.concatenate %15, %18, %10, %21, %24 in 2 : vector<8x16x128xbf16>, vector<8x16x128xbf16>, vector<8x16x128xbf16>, vector<8x16x128xbf16>, vector<8x16x128xbf16> -> vector<8x16x640xbf16>
    %26 = vector.shape_cast %25 : vector<8x16x640xbf16> to vector<128x640xbf16>
    %cst_11 = arith.constant dense<0.000000e+00> : vector<128x256xf32>
    %27 = tpu.matmul %26, %11, %cst_11 {dimension_numbers = #tpu.dot_dimension_numbers<[1], [0], [0], [1], [0, 0, 1, 1], [], []>} : vector<128x640xbf16>, vector<640x256xbf16>, vector<128x256xf32> -> vector<128x256xf32>
    %28 = vector.broadcast %12 : vector<1x256xf32> to vector<128x256xf32>
    %29 = arith.addf %27, %28 : vector<128x256xf32>
    %cst_12 = arith.constant 0.000000e+00 : f32
    %30 = vector.broadcast %cst_12 : f32 to vector<128x256xf32>
    %31 = arith.maximumf %29, %30 : vector<128x256xf32>
    %32 = vector.shape_cast %31 : vector<128x256xf32> to vector<8x16x256xf32>
    %33 = arith.truncf %32 : vector<8x16x256xf32> to vector<8x16x256xbf16>
    %c0_13 = arith.constant 0 : index
    %c0_14 = arith.constant 0 : index
    %34 = vector.load %arg6[%c0_13, %c0_14] : memref<768x128xbf16, #tpu.memory_space<vmem>>, vector<768x128xbf16>
    %c0_15 = arith.constant 0 : index
    %c0_16 = arith.constant 0 : index
    %35 = vector.load %arg7[%c0_15, %c0_16] : memref<1x128xf32, #tpu.memory_space<vmem>>, vector<1x128xf32>
    %36 = vector.extract_strided_slice %33 {offsets = [0, 15, 0], sizes = [8, 1, 256], strides = [1, 1, 1]} : vector<8x16x256xbf16> to vector<8x1x256xbf16>
    %37 = vector.extract_strided_slice %33 {offsets = [0, 0, 0], sizes = [8, 15, 256], strides = [1, 1, 1]} : vector<8x16x256xbf16> to vector<8x15x256xbf16>
    %38 = tpu.concatenate %36, %37 in 1 : vector<8x1x256xbf16>, vector<8x15x256xbf16> -> vector<8x16x256xbf16>
    %39 = vector.extract_strided_slice %33 {offsets = [0, 1, 0], sizes = [8, 15, 256], strides = [1, 1, 1]} : vector<8x16x256xbf16> to vector<8x15x256xbf16>
    %40 = vector.extract_strided_slice %33 {offsets = [0, 0, 0], sizes = [8, 1, 256], strides = [1, 1, 1]} : vector<8x16x256xbf16> to vector<8x1x256xbf16>
    %41 = tpu.concatenate %39, %40 in 1 : vector<8x15x256xbf16>, vector<8x1x256xbf16> -> vector<8x16x256xbf16>
    %42 = tpu.concatenate %38, %33, %41 in 2 : vector<8x16x256xbf16>, vector<8x16x256xbf16>, vector<8x16x256xbf16> -> vector<8x16x768xbf16>
    %43 = vector.shape_cast %42 : vector<8x16x768xbf16> to vector<128x768xbf16>
    %cst_17 = arith.constant dense<0.000000e+00> : vector<128x128xf32>
    %44 = tpu.matmul %43, %34, %cst_17 {dimension_numbers = #tpu.dot_dimension_numbers<[1], [0], [0], [1], [0, 0, 1, 1], [], []>} : vector<128x768xbf16>, vector<768x128xbf16>, vector<128x128xf32> -> vector<128x128xf32>
    %45 = vector.broadcast %35 : vector<1x128xf32> to vector<128x128xf32>
    %46 = arith.addf %44, %45 : vector<128x128xf32>
    %cst_18 = arith.constant 0.000000e+00 : f32
    %47 = vector.broadcast %cst_18 : f32 to vector<128x128xf32>
    %48 = arith.maximumf %46, %47 : vector<128x128xf32>
    %49 = vector.shape_cast %48 : vector<128x128xf32> to vector<8x16x128xf32>
    %cst_19 = arith.constant dense<0.000000e+00> : vector<8x128xf32>
    %50 = vector.multi_reduction <add>, %49, %cst_19 [1] : vector<8x16x128xf32> to vector<8x128xf32>
    %cst_20 = arith.constant 1.600000e+01 : f32
    %51 = vector.broadcast %cst_20 : f32 to vector<8x128xf32>
    %52 = arith.divf %50, %51 : vector<8x128xf32>
    %c0_21 = arith.constant 0 : index
    %c0_22 = arith.constant 0 : index
    %53 = vector.load %arg8[%c0_21, %c0_22] : memref<1x128xf32, #tpu.memory_space<vmem>>, vector<1x128xf32>
    %54 = tpu.transpose %52, [1, 0] : vector<8x128xf32> -> vector<128x8xf32>
    %cst_23 = arith.constant dense<0.000000e+00> : vector<1x8xf32>
    %55 = tpu.matmul %53, %54, %cst_23 {dimension_numbers = #tpu.dot_dimension_numbers<[1], [0], [0], [1], [0, 0, 1, 1], [], []>} : vector<1x128xf32>, vector<128x8xf32>, vector<1x8xf32> -> vector<1x8xf32>
    %c0_24 = arith.constant 0 : index
    %c0_25 = arith.constant 0 : index
    %56 = vector.load %arg9[%c0_24, %c0_25] : memref<1x1xf32, #tpu.memory_space<vmem>>, vector<1x1xf32>
    %57 = vector.broadcast %56 : vector<1x1xf32> to vector<1x8xf32>
    %58 = arith.addf %55, %57 : vector<1x8xf32>
    %59 = arith.negf %58 : vector<1x8xf32>
    %60 = math.exp %59 : vector<1x8xf32>
    %cst_26 = arith.constant 1.000000e+00 : f32
    %61 = vector.broadcast %cst_26 : f32 to vector<1x8xf32>
    %62 = arith.addf %61, %60 : vector<1x8xf32>
    %63 = arith.divf %61, %62 : vector<1x8xf32>
    %64 = vector.shape_cast %63 : vector<1x8xf32> to vector<1x1x8xf32>
    %c0_27 = arith.constant 0 : index
    %c0_28 = arith.constant 0 : index
    %c0_29 = arith.constant 0 : index
    %65 = vector.load %arg10[%c0_27, %c0_28, %c0_29] : memref<1x1x8xf32, #tpu.memory_space<vmem>>, vector<1x1x8xf32>
    tpu.vector_store %arg10[%c0_27, %c0_28, %c0_29], %64 {strides = array<i32>} : memref<1x1x8xf32, #tpu.memory_space<vmem>>, vector<1x1x8xf32>,
    return
  }
  func.func @transform_0(%arg0: i32) -> (i32, i32, i32) {
    %c0_i32 = arith.constant 0 : i32
    %c0_i32_0 = arith.constant 0 : i32
    %c0_i32_1 = arith.constant 0 : i32
    return %arg0, %c0_i32, %c0_i32_0 : i32, i32, i32
  }
  func.func @transform_1(%arg0: i32) -> (i32, i32) {
    %c0_i32 = arith.constant 0 : i32
    %c0_i32_0 = arith.constant 0 : i32
    %c0_i32_1 = arith.constant 0 : i32
    return %c0_i32, %c0_i32_0 : i32, i32
  }
  func.func @transform_2(%arg0: i32) -> (i32, i32) {
    %c0_i32 = arith.constant 0 : i32
    %c0_i32_0 = arith.constant 0 : i32
    %c0_i32_1 = arith.constant 0 : i32
    return %c0_i32, %c0_i32_0 : i32, i32
  }
  func.func @transform_3(%arg0: i32) -> (i32, i32) {
    %c0_i32 = arith.constant 0 : i32
    %c0_i32_0 = arith.constant 0 : i32
    %c0_i32_1 = arith.constant 0 : i32
    return %c0_i32, %c0_i32_0 : i32, i32
  }
  func.func @transform_4(%arg0: i32) -> (i32, i32) {
    %c0_i32 = arith.constant 0 : i32
    %c0_i32_0 = arith.constant 0 : i32
    %c0_i32_1 = arith.constant 0 : i32
    return %c0_i32, %c0_i32_0 : i32, i32
  }
  func.func @transform_5(%arg0: i32) -> (i32, i32) {
    %c0_i32 = arith.constant 0 : i32
    %c0_i32_0 = arith.constant 0 : i32
    %c0_i32_1 = arith.constant 0 : i32
    return %c0_i32, %c0_i32_0 : i32, i32
  }
  func.func @transform_6(%arg0: i32) -> (i32, i32) {
    %c0_i32 = arith.constant 0 : i32
    %c0_i32_0 = arith.constant 0 : i32
    %c0_i32_1 = arith.constant 0 : i32
    return %c0_i32, %c0_i32_0 : i32, i32
  }
  func.func @transform_7(%arg0: i32) -> (i32, i32) {
    %c0_i32 = arith.constant 0 : i32
    %c0_i32_0 = arith.constant 0 : i32
    %c0_i32_1 = arith.constant 0 : i32
    return %c0_i32, %c0_i32_0 : i32, i32
  }
  func.func @transform_8(%arg0: i32) -> (i32, i32) {
    %c0_i32 = arith.constant 0 : i32
    %c0_i32_0 = arith.constant 0 : i32
    %c0_i32_1 = arith.constant 0 : i32
    return %c0_i32, %c0_i32_0 : i32, i32
  }
  func.func @transform_9(%arg0: i32) -> (i32, i32, i32) {
    %c0_i32 = arith.constant 0 : i32
    %c0_i32_0 = arith.constant 0 : i32
    %c0_i32_1 = arith.constant 0 : i32
    return %arg0, %c0_i32, %c0_i32_0 : i32, i32, i32
  }
}

</mosaic_0001>

<llo_original>
// kernel: circular_fcn_forward.1
$region0: #{circular_fcn_forward.1}
  #allocation0 [shape = 'u32[]', space=smem, size = 0x4, offset = 0x4, fixed_abs, tag = 'smem constant byte address 0x4 - core index']
  #allocation1 [shape = 'u32[144,128]{1,0:T(1,128)}', space=vmem, size = 0x12000, scoped, tag = 'internal scratch']
  #allocation2 [shape = 'f32[1,1]{1,0:T(1,128)S(1)}', space=vmem, size = 0x200, scoped, tag = 'scoped memory for circular_fcn_forward.1']
  %s0 = inlined_call_operand.vmem [shape: f32[8,16,14], index: 0, kind: input, shape index: {}]
  %s1 = inlined_call_operand.vmem [shape: f32[14,128], index: 1, kind: input, shape index: {}]
  %s2 = inlined_call_operand.vmem [shape: f32[1,128], index: 2, kind: input, shape index: {}]
  %s3 = inlined_call_operand.hbm [shape: bf16[640,256], index: 3, kind: input, shape index: {}]
  %s4 = inlined_call_operand.vmem [shape: f32[1,256], index: 4, kind: input, shape index: {}]
  %s5 = inlined_call_operand.vmem [shape: bf16[768,128], index: 5, kind: input, shape index: {}]
  %s6 = inlined_call_operand.vmem [shape: f32[1,128], index: 6, kind: input, shape index: {}]
  %s7 = inlined_call_operand.vmem [shape: f32[1,128], index: 7, kind: input, shape index: {}]
  %s8 = inlined_call_operand.<no memory space> [shape: f32[1,1], index: 8, kind: input, shape index: {}]
  %s9 = inlined_call_operand.vmem [shape: f32[1,1,8], index: 9, kind: output, shape index: {}]
  %s10 = sld [smem:[#allocation0]]
  $region50: #{circular_fcn_forward.1} parent=0
    _
  %s12 = ssub.s32 1, %s10
  %s13 = scalar_select 0, %s12, %s10
  %v14 = vstv %s8
  %15 = vst [vmem:[#allocation2] sm:$0x1] %v14
  $region1: #{circular_fcn_forward.1} parent=0
    #allocation3 [shape = 'u8[327680]{0}', space=vmem, size = 0x50000, scoped, tag = 'input window, operand 3, single buffered']
    #allocation4 [shape = 's32[1]{0}', space=sflag, size = 0x4, scoped, tag = 'scoped memory for circular_fcn_forward.1']
    %16 = vsyncpa [#allocation4], 0
    // Predicated region
    $region2: #{circular_fcn_forward.1} parent=1 // pred_check
      _
    $region3: #{circular_fcn_forward.1} parent=1 // pred_check_branch
      %18 = sbr.rel (0) target = $region5
    $region4: #{circular_fcn_forward.1} parent=1 // pred_region
      _
    $region5: #{circular_fcn_forward.1} parent=1 // pred_fallthru
      _
    // Predicated region
    $region6: #{circular_fcn_forward.1} parent=1 // pred_check
      _
    $region7: #{circular_fcn_forward.1} parent=1 // pred_check_branch
      %20 = sbr.rel (0) target = $region9
    $region8: #{circular_fcn_forward.1} parent=1 // pred_region
      _
    $region9: #{circular_fcn_forward.1} parent=1 // pred_fallthru
      _
    // Predicated region
    $region10: #{circular_fcn_forward.1} parent=1 // pred_check
      _
    $region11: #{circular_fcn_forward.1} parent=1 // pred_check_branch
      %22 = sbr.rel (0) target = $region13
    $region12: #{circular_fcn_forward.1} parent=1 // pred_region
      _
    $region13: #{circular_fcn_forward.1} parent=1 // pred_fallthru
      _
    // Predicated region
    $region14: #{circular_fcn_forward.1} parent=1 // pred_check
      _
    $region15: #{circular_fcn_forward.1} parent=1 // pred_check_branch
      %24 = sbr.rel (0) target = $region17
    $region16: #{circular_fcn_forward.1} parent=1 // pred_region
      %s26 = ssub.s32 10240, 10240
      %27 = vsyncadd [#allocation4], %s26
      %s28 = sshll.u32 [#allocation3], 4
      %s29 = int_to_ptr.vmem [resolvable:$true] %s28
      %34 = dma.hbm_to_vmem [thread:$0]  %s3, 10240, %s29, [#allocation4], 128, 128, 8
    $region17: #{circular_fcn_forward.1} parent=1 // pred_fallthru
      _
    // Predicated region
    $region18: #{circular_fcn_forward.1} parent=1 // pred_check
      _
    $region19: #{circular_fcn_forward.1} parent=1 // pred_check_branch
      %36 = sbr.rel (0) target = $region21
    $region20: #{circular_fcn_forward.1} parent=1 // pred_region
      _
    $region21: #{circular_fcn_forward.1} parent=1 // pred_fallthru
      _
    // Predicated region
    $region22: #{circular_fcn_forward.1} parent=1 // pred_check
      _
    $region23: #{circular_fcn_forward.1} parent=1 // pred_check_branch
      %38 = sbr.rel (0) target = $region25
    $region24: #{circular_fcn_forward.1} parent=1 // pred_region
      _
    $region25: #{circular_fcn_forward.1} parent=1 // pred_fallthru
      _
    // Predicated region
    $region26: #{circular_fcn_forward.1} parent=1 // pred_check
      _
    $region27: #{circular_fcn_forward.1} parent=1 // pred_check_branch
      %40 = sbr.rel (0) target = $region29
    $region28: #{circular_fcn_forward.1} parent=1 // pred_region
      _
    $region29: #{circular_fcn_forward.1} parent=1 // pred_fallthru
      _
    // Predicated region
    $region30: #{circular_fcn_forward.1} parent=1 // pred_check
      _
    $region31: #{circular_fcn_forward.1} parent=1 // pred_check_branch
      %42 = sbr.rel (0) target = $region33
    $region32: #{circular_fcn_forward.1} parent=1 // pred_region
      _
    $region33: #{circular_fcn_forward.1} parent=1 // pred_fallthru
      _
    // Predicated region
    $region34: #{circular_fcn_forward.1} parent=1 // pred_check
      _
    $region35: #{circular_fcn_forward.1} parent=1 // pred_check_branch
      %44 = sbr.rel (0) target = $region37
    $region36: #{circular_fcn_forward.1} parent=1 // pred_region
      _
    $region37: #{circular_fcn_forward.1} parent=1 // pred_fallthru
      _
    // Predicated region
    $region38: #{circular_fcn_forward.1} parent=1 // pred_check
      _
    $region39: #{circular_fcn_forward.1} parent=1 // pred_check_branch
      %46 = sbr.rel (0) target = $region41
    $region40: #{circular_fcn_forward.1} parent=1 // pred_region
      %47 = dma.done [#allocation4], 10240
    $region41: #{circular_fcn_forward.1} parent=1 // pred_fallthru
      _
    %v49 = vld [vmem:[%s0] sm:$0xff]
    %v50 = vld [vmem:[%s0 + $0x8] sm:$0xff]
    %v51 = vld [vmem:[%s0 + $0x10] sm:$0xff]
    %v52 = vld [vmem:[%s0 + $0x18] sm:$0xff]
    %v53 = vld [vmem:[%s0 + $0x20] sm:$0xff]
    %v54 = vld [vmem:[%s0 + $0x28] sm:$0xff]
    %v55 = vld [vmem:[%s0 + $0x30] sm:$0xff]
    %v56 = vld [vmem:[%s0 + $0x38] sm:$0xff]
    %v57 = vld [vmem:[%s0 + $0x40] sm:$0xff]
    %v58 = vld [vmem:[%s0 + $0x48] sm:$0xff]
    %v59 = vld [vmem:[%s0 + $0x50] sm:$0xff]
    %v60 = vld [vmem:[%s0 + $0x58] sm:$0xff]
    %v61 = vld [vmem:[%s0 + $0x60] sm:$0xff]
    %v62 = vld [vmem:[%s0 + $0x68] sm:$0xff]
    %v63 = vld [vmem:[%s0 + $0x70] sm:$0xff]
    %v64 = vld [vmem:[%s0 + $0x78] sm:$0xff]
    %v65 = vld [vmem:[%s1] sm:$0xff]
    %v66 = vld [vmem:[%s1 + $0x8] sm:$0x3f]
    %v67 = vld [vmem:[%s2] sm:$0x1]
    %v69 = vlaneseq
    %v70 = vshrl.u32 %v69, 7
    %v71 = vsub.s32 0, %v70
    %v72 = vrot.slane %v67, %v71
    %vm74 = vcmask 113664
    %v76 = vsel %vm74, %v49, 0
    %v79 = vsel %vm74, %v50, 0
    %v82 = vsel %vm74, %v51, 0
    %v85 = vsel %vm74, %v52, 0
    %v88 = vsel %vm74, %v53, 0
    %v91 = vsel %vm74, %v54, 0
    %v94 = vsel %vm74, %v55, 0
    %v97 = vsel %vm74, %v56, 0
    %v100 = vsel %vm74, %v57, 0
    %v103 = vsel %vm74, %v58, 0
    %v106 = vsel %vm74, %v59, 0
    %v109 = vsel %vm74, %v60, 0
    %v112 = vsel %vm74, %v61, 0
    %v115 = vsel %vm74, %v62, 0
    %v118 = vsel %vm74, %v63, 0
    %v121 = vsel %vm74, %v64, 0
    %vm123 = vcmask 1045504
    %v125 = vsel %vm123, %v66, 0
    %127 = vmatprep.subr.mxu0 0.0
    %128 = vmatpush1.msra.mxu0 %v65
    %129 = vmatprep.subr.mxu0 0.0
    %130 = vmatpush1.msra.mxu0 %v125
    %131 = vmatprep.subr.mxu0 0.0
    %132 = vmatpush1.msra.mxu0 0.0
    %133 = vmatprep.subr.mxu0 0.0
    %134 = vmatpush1.msra.mxu0 0.0
    %135 = vmatprep.subr.mxu0 0.0
    %136 = vmatpush1.msra.mxu0 0.0
    %137 = vmatprep.subr.mxu0 0.0
    %138 = vmatpush1.msra.mxu0 0.0
    %139 = vmatprep.subr.mxu0 0.0
    %140 = vmatpush1.msra.mxu0 0.0
    %141 = vmatprep.subr.mxu0 0.0
    %142 = vmatpush1.msra.mxu0 0.0
    %143 = vmatprep.subr.mxu0 0.0
    %144 = vmatpush1.msra.mxu0 0.0
    %145 = vmatprep.subr.mxu0 0.0
    %146 = vmatpush1.msra.mxu0 0.0
    %147 = vmatprep.subr.mxu0 0.0
    %148 = vmatpush1.msra.mxu0 0.0
    %149 = vmatprep.subr.mxu0 0.0
    %150 = vmatpush1.msra.mxu0 0.0
    %151 = vmatprep.subr.mxu0 0.0
    %152 = vmatpush1.msra.mxu0 0.0
    %153 = vmatprep.subr.mxu0 0.0
    %154 = vmatpush1.msra.mxu0 0.0
    %155 = vmatprep.subr.mxu0 0.0
    %156 = vmatpush1.msra.mxu0 0.0
    %157 = vmatprep.subr.mxu0 0.0
    %158 = vmatpush1.msra.mxu0 0.0
    %159 = vmatprep.subr.mxu0 0.0
    %160 = vmatpush1.msra.mxu0 0.0
    %161 = vmatprep.subr.mxu0 0.0
    %162 = vmatpush1.msra.mxu0 0.0
    %163 = vmatprep.subr.mxu0 0.0
    %164 = vmatpush1.msra.mxu0 0.0
    %165 = vmatprep.subr.mxu0 0.0
    %166 = vmatpush1.msra.mxu0 0.0
    %167 = vmatprep.subr.mxu0 0.0
    %168 = vmatpush1.msra.mxu0 0.0
    %169 = vmatprep.subr.mxu0 0.0
    %170 = vmatpush1.msra.mxu0 0.0
    %171 = vmatprep.subr.mxu0 0.0
    %172 = vmatpush1.msra.mxu0 0.0
    %173 = vmatprep.subr.mxu0 0.0
    %174 = vmatpush1.msra.mxu0 0.0
    %175 = vmatprep.subr.mxu0 0.0
    %176 = vmatpush1.msra.mxu0 0.0
    %177 = vmatprep.subr.mxu0 0.0
    %178 = vmatpush1.msra.mxu0 0.0
    %179 = vmatprep.subr.mxu0 0.0
    %180 = vmatpush1.msra.mxu0 0.0
    %181 = vmatprep.subr.mxu0 0.0
    %182 = vmatpush1.msra.mxu0 0.0
    %183 = vmatprep.subr.mxu0 0.0
    %184 = vmatpush1.msra.mxu0 0.0
    %185 = vmatprep.subr.mxu0 0.0
    %186 = vmatpush1.msra.mxu0 0.0
    %187 = vmatprep.subr.mxu0 0.0
    %188 = vmatpush1.msra.mxu0 0.0
    %189 = vmatprep.subr.mxu0 0.0
    %190 = vmatpush1.msra.mxu0 0.0
    %191 = vmatprep.mubr.f32.mxu0 0.0
    %192 = vmatmul.mubr.f32.gmra.mrb[0].mxu0 %v76
    %v193 = vpop.f32.mrb[0].mxu0
    %v194 = vadd.f32 %v72, %v193
    %v195 = vpop.f32.mrb[0].mxu0
    %196 = vmatprep.mubr.f32.mxu0 0.0
    %197 = vmatmul.mubr.f32.gmra.mrb[0].mxu0 %v79
    %v198 = vpop.f32.mrb[0].mxu0
    %v199 = vadd.f32 %v72, %v198
    %v200 = vpop.f32.mrb[0].mxu0
    %201 = vmatprep.mubr.f32.mxu0 0.0
    %202 = vmatmul.mubr.f32.gmra.mrb[0].mxu0 %v82
    %v203 = vpop.f32.mrb[0].mxu0
    %v204 = vadd.f32 %v72, %v203
    %v205 = vpop.f32.mrb[0].mxu0
    %206 = vmatprep.mubr.f32.mxu0 0.0
    %207 = vmatmul.mubr.f32.gmra.mrb[0].mxu0 %v85
    %v208 = vpop.f32.mrb[0].mxu0
    %v209 = vadd.f32 %v72, %v208
    %v210 = vpop.f32.mrb[0].mxu0
    %211 = vmatprep.mubr.f32.mxu0 0.0
    %212 = vmatmul.mubr.f32.gmra.mrb[0].mxu0 %v88
    %v213 = vpop.f32.mrb[0].mxu0
    %v214 = vadd.f32 %v72, %v213
    %v215 = vpop.f32.mrb[0].mxu0
    %216 = vmatprep.mubr.f32.mxu0 0.0
    %217 = vmatmul.mubr.f32.gmra.mrb[0].mxu0 %v91
    %v218 = vpop.f32.mrb[0].mxu0
    %v219 = vadd.f32 %v72, %v218
    %v220 = vpop.f32.mrb[0].mxu0
    %221 = vmatprep.mubr.f32.mxu0 0.0
    %222 = vmatmul.mubr.f32.gmra.mrb[0].mxu0 %v94
    %v223 = vpop.f32.mrb[0].mxu0
    %v224 = vadd.f32 %v72, %v223
    %v225 = vpop.f32.mrb[0].mxu0
    %226 = vmatprep.mubr.f32.mxu0 0.0
    %227 = vmatmul.mubr.f32.gmra.mrb[0].mxu0 %v97
    %v228 = vpop.f32.mrb[0].mxu0
    %v229 = vadd.f32 %v72, %v228
    %v230 = vpop.f32.mrb[0].mxu0
    %231 = vmatprep.mubr.f32.mxu0 0.0
    %232 = vmatmul.mubr.f32.gmra.mrb[0].mxu0 %v100
    %v233 = vpop.f32.mrb[0].mxu0
    %v234 = vadd.f32 %v72, %v233
    %v235 = vpop.f32.mrb[0].mxu0
    %236 = vmatprep.mubr.f32.mxu0 0.0
    %237 = vmatmul.mubr.f32.gmra.mrb[0].mxu0 %v103
    %v238 = vpop.f32.mrb[0].mxu0
    %v239 = vadd.f32 %v72, %v238
    %v240 = vpop.f32.mrb[0].mxu0
    %241 = vmatprep.mubr.f32.mxu0 0.0
    %242 = vmatmul.mubr.f32.gmra.mrb[0].mxu0 %v106
    %v243 = vpop.f32.mrb[0].mxu0
    %v244 = vadd.f32 %v72, %v243
    %v245 = vpop.f32.mrb[0].mxu0
    %246 = vmatprep.mubr.f32.mxu0 0.0
    %247 = vmatmul.mubr.f32.gmra.mrb[0].mxu0 %v109
    %v248 = vpop.f32.mrb[0].mxu0
    %v249 = vadd.f32 %v72, %v248
    %v250 = vpop.f32.mrb[0].mxu0
    %251 = vmatprep.mubr.f32.mxu0 0.0
    %252 = vmatmul.mubr.f32.gmra.mrb[0].mxu0 %v112
    %v253 = vpop.f32.mrb[0].mxu0
    %v254 = vadd.f32 %v72, %v253
    %v255 = vpop.f32.mrb[0].mxu0
    %256 = vmatprep.mubr.f32.mxu0 0.0
    %257 = vmatmul.mubr.f32.gmra.mrb[0].mxu0 %v115
    %v258 = vpop.f32.mrb[0].mxu0
    %v259 = vadd.f32 %v72, %v258
    %v260 = vpop.f32.mrb[0].mxu0
    %261 = vmatprep.mubr.f32.mxu0 0.0
    %262 = vmatmul.mubr.f32.gmra.mrb[0].mxu0 %v118
    %v263 = vpop.f32.mrb[0].mxu0
    %v264 = vadd.f32 %v72, %v263
    %v265 = vpop.f32.mrb[0].mxu0
    %266 = vmatprep.mubr.f32.mxu0 0.0
    %267 = vmatmul.mubr.f32.gmra.mrb[0].mxu0 %v121
    %v268 = vpop.f32.mrb[0].mxu0
    %v269 = vadd.f32 %v72, %v268
    %v270 = vpop.f32.mrb[0].mxu0
    %271 = vdwg.mxu0
    %v272 = vmax.f32 %v194, 0.0
    %v273 = vmax.f32 %v199, 0.0
    %v274 = vmax.f32 %v204, 0.0
    %v275 = vmax.f32 %v209, 0.0
    %v276 = vmax.f32 %v214, 0.0
    %v277 = vmax.f32 %v219, 0.0
    %v278 = vmax.f32 %v224, 0.0
    %v279 = vmax.f32 %v229, 0.0
    %v280 = vmax.f32 %v234, 0.0
    %v281 = vmax.f32 %v239, 0.0
    %v282 = vmax.f32 %v244, 0.0
    %v283 = vmax.f32 %v249, 0.0
    %v284 = vmax.f32 %v254, 0.0
    %v285 = vmax.f32 %v259, 0.0
    %v286 = vmax.f32 %v264, 0.0
    %v287 = vmax.f32 %v269, 0.0
    %v288 = vpack.c.bf16 %v273, %v272
    %v289 = vpack.c.bf16 %v275, %v274
    %v290 = vpack.c.bf16 %v277, %v276
    %v291 = vpack.c.bf16 %v279, %v278
    %v292 = vpack.c.bf16 %v281, %v280
    %v293 = vpack.c.bf16 %v283, %v282
    %v294 = vpack.c.bf16 %v285, %v284
    %v295 = vpack.c.bf16 %v287, %v286
    %v296 = vld [vmem:[#allocation3] sm:$0xff]
    %v297 = vld [vmem:[#allocation3 + $0x8] sm:$0xff]
    %v298 = vld [vmem:[#allocation3 + $0x10] sm:$0xff]
    %v299 = vld [vmem:[#allocation3 + $0x18] sm:$0xff]
    %v300 = vld [vmem:[#allocation3 + $0x20] sm:$0xff]
    %v301 = vld [vmem:[#allocation3 + $0x28] sm:$0xff]
    %v302 = vld [vmem:[#allocation3 + $0x30] sm:$0xff]
    %v303 = vld [vmem:[#allocation3 + $0x38] sm:$0xff]
    %v304 = vld [vmem:[#allocation3 + $0x40] sm:$0xff]
    %v305 = vld [vmem:[#allocation3 + $0x48] sm:$0xff]
    %v306 = vld [vmem:[#allocation3 + $0x50] sm:$0xff]
    %v307 = vld [vmem:[#allocation3 + $0x58] sm:$0xff]
    %v308 = vld [vmem:[#allocation3 + $0x60] sm:$0xff]
    %v309 = vld [vmem:[#allocation3 + $0x68] sm:$0xff]
    %v310 = vld [vmem:[#allocation3 + $0x70] sm:$0xff]
    %v311 = vld [vmem:[#allocation3 + $0x78] sm:$0xff]
    %v312 = vld [vmem:[#allocation3 + $0x80] sm:$0xff]
    %v313 = vld [vmem:[#allocation3 + $0x88] sm:$0xff]
    %v314 = vld [vmem:[#allocation3 + $0x90] sm:$0xff]
    %v315 = vld [vmem:[#allocation3 + $0x98] sm:$0xff]
    %v316 = vld [vmem:[#allocation3 + $0xa0] sm:$0xff]
    %v317 = vld [vmem:[#allocation3 + $0xa8] sm:$0xff]
    %v318 = vld [vmem:[#allocation3 + $0xb0] sm:$0xff]
    %v319 = vld [vmem:[#allocation3 + $0xb8] sm:$0xff]
    %v320 = vld [vmem:[#allocation3 + $0xc0] sm:$0xff]
    %v321 = vld [vmem:[#allocation3 + $0xc8] sm:$0xff]
    %v322 = vld [vmem:[#allocation3 + $0xd0] sm:$0xff]
    %v323 = vld [vmem:[#allocation3 + $0xd8] sm:$0xff]
    %v324 = vld [vmem:[#allocation3 + $0xe0] sm:$0xff]
    %v325 = vld [vmem:[#allocation3 + $0xe8] sm:$0xff]
    %v326 = vld [vmem:[#allocation3 + $0xf0] sm:$0xff]
    %v327 = vld [vmem:[#allocation3 + $0xf8] sm:$0xff]
    %v328 = vld [vmem:[#allocation3 + $0x100] sm:$0xff]
    %v329 = vld [vmem:[#allocation3 + $0x108] sm:$0xff]
    %v330 = vld [vmem:[#allocation3 + $0x110] sm:$0xff]
    %v331 = vld [vmem:[#allocation3 + $0x118] sm:$0xff]
    %v332 = vld [vmem:[#allocation3 + $0x120] sm:$0xff]
    %v333 = vld [vmem:[#allocation3 + $0x128] sm:$0xff]
    %v334 = vld [vmem:[#allocation3 + $0x130] sm:$0xff]
    %v335 = vld [vmem:[#allocation3 + $0x138] sm:$0xff]
    %v336 = vld [vmem:[#allocation3 + $0x140] sm:$0xff]
    %v337 = vld [vmem:[#allocation3 + $0x148] sm:$0xff]
    %v338 = vld [vmem:[#allocation3 + $0x150] sm:$0xff]
    %v339 = vld [vmem:[#allocation3 + $0x158] sm:$0xff]
    %v340 = vld [vmem:[#allocation3 + $0x160] sm:$0xff]
    %v341 = vld [vmem:[#allocation3 + $0x168] sm:$0xff]
    %v342 = vld [vmem:[#allocation3 + $0x170] sm:$0xff]
    %v343 = vld [vmem:[#allocation3 + $0x178] sm:$0xff]
    %v344 = vld [vmem:[#allocation3 + $0x180] sm:$0xff]
    %v345 = vld [vmem:[#allocation3 + $0x188] sm:$0xff]
    %v346 = vld [vmem:[#allocation3 + $0x190] sm:$0xff]
    %v347 = vld [vmem:[#allocation3 + $0x198] sm:$0xff]
    %v348 = vld [vmem:[#allocation3 + $0x1a0] sm:$0xff]
    %v349 = vld [vmem:[#allocation3 + $0x1a8] sm:$0xff]
    %v350 = vld [vmem:[#allocation3 + $0x1b0] sm:$0xff]
    %v351 = vld [vmem:[#allocation3 + $0x1b8] sm:$0xff]
    %v352 = vld [vmem:[#allocation3 + $0x1c0] sm:$0xff]
    %v353 = vld [vmem:[#allocation3 + $0x1c8] sm:$0xff]
    %v354 = vld [vmem:[#allocation3 + $0x1d0] sm:$0xff]
    %v355 = vld [vmem:[#allocation3 + $0x1d8] sm:$0xff]
    %v356 = vld [vmem:[#allocation3 + $0x1e0] sm:$0xff]
    %v357 = vld [vmem:[#allocation3 + $0x1e8] sm:$0xff]
    %v358 = vld [vmem:[#allocation3 + $0x1f0] sm:$0xff]
    %v359 = vld [vmem:[#allocation3 + $0x1f8] sm:$0xff]
    %v360 = vld [vmem:[#allocation3 + $0x200] sm:$0xff]
    %v361 = vld [vmem:[#allocation3 + $0x208] sm:$0xff]
    %v362 = vld [vmem:[#allocation3 + $0x210] sm:$0xff]
    %v363 = vld [vmem:[#allocation3 + $0x218] sm:$0xff]
    %v364 = vld [vmem:[#allocation3 + $0x220] sm:$0xff]
    %v365 = vld [vmem:[#allocation3 + $0x228] sm:$0xff]
    %v366 = vld [vmem:[#allocation3 + $0x230] sm:$0xff]
    %v367 = vld [vmem:[#allocation3 + $0x238] sm:$0xff]
    %v368 = vld [vmem:[#allocation3 + $0x240] sm:$0xff]
    %v369 = vld [vmem:[#allocation3 + $0x248] sm:$0xff]
    %v370 = vld [vmem:[#allocation3 + $0x250] sm:$0xff]
    %v371 = vld [vmem:[#allocation3 + $0x258] sm:$0xff]
    %v372 = vld [vmem:[#allocation3 + $0x260] sm:$0xff]
    %v373 = vld [vmem:[#allocation3 + $0x268] sm:$0xff]
    %v374 = vld [vmem:[#allocation3 + $0x270] sm:$0xff]
    %v375 = vld [vmem:[#allocation3 + $0x278] sm:$0xff]
    %v376 = vld [vmem:[%s4] sm:$0x3]
    %v385 = vrot.slane %v288, 7
    %v386 = vrot.slane %v289, 7
    %v387 = vrot.slane %v290, 7
    %v388 = vrot.slane %v291, 7
    %v389 = vrot.slane %v292, 7
    %v390 = vrot.slane %v293, 7
    %v391 = vrot.slane %v294, 7
    %v392 = vrot.slane %v295, 7
    %vm393 = vcmask 1040384
    %v395 = vsel %vm393, %v385, %v385
    %v398 = vsel %vm393, %v386, %v386
    %v401 = vsel %vm393, %v387, %v387
    %v404 = vsel %vm393, %v388, %v388
    %v407 = vsel %vm393, %v389, %v389
    %v410 = vsel %vm393, %v390, %v390
    %v413 = vsel %vm393, %v391, %v391
    %v416 = vsel %vm393, %v392, %v392
    %v419 = vshrl.u32 %v288, 16
    %v421 = vrot.slane %v419, 7
    %v423 = vshrl.u32 %v289, 16
    %v425 = vrot.slane %v423, 7
    %v427 = vshrl.u32 %v290, 16
    %v429 = vrot.slane %v427, 7
    %v431 = vshrl.u32 %v291, 16
    %v433 = vrot.slane %v431, 7
    %v435 = vshrl.u32 %v292, 16
    %v437 = vrot.slane %v435, 7
    %v439 = vshrl.u32 %v293, 16
    %v441 = vrot.slane %v439, 7
    %v443 = vshrl.u32 %v294, 16
    %v445 = vrot.slane %v443, 7
    %v447 = vshrl.u32 %v295, 16
    %v449 = vrot.slane %v447, 7
    %v458 = vshll.u32 %v288, 16
    %v460 = vor.u32 %v421, %v458
    %v461 = vshll.u32 %v289, 16
    %v463 = vor.u32 %v425, %v461
    %v464 = vshll.u32 %v290, 16
    %v466 = vor.u32 %v429, %v464
    %v467 = vshll.u32 %v291, 16
    %v469 = vor.u32 %v433, %v467
    %v470 = vshll.u32 %v292, 16
    %v472 = vor.u32 %v437, %v470
    %v473 = vshll.u32 %v293, 16
    %v475 = vor.u32 %v441, %v473
    %v476 = vshll.u32 %v294, 16
    %v478 = vor.u32 %v445, %v476
    %v479 = vshll.u32 %v295, 16
    %v481 = vor.u32 %v449, %v479
    %vm490 = vcmask 1040384
    %vm491 = vsmask.f32 256
    %vm492 = vmand %vm490, %vm491
    %v493 = vsel %vm492, %v421, %v460
    %v494 = vsel %vm492, %v425, %v463
    %v495 = vsel %vm492, %v429, %v466
    %v496 = vsel %vm492, %v433, %v469
    %v497 = vsel %vm492, %v437, %v472
    %v498 = vsel %vm492, %v441, %v475
    %v499 = vsel %vm492, %v445, %v478
    %v500 = vsel %vm492, %v449, %v481
    %v501 = vrot.slane %v458, 1
    %v502 = vor.u32 %v419, %v501
    %v503 = vrot.slane %v461, 1
    %v504 = vor.u32 %v423, %v503
    %v505 = vrot.slane %v464, 1
    %v506 = vor.u32 %v427, %v505
    %v507 = vrot.slane %v467, 1
    %v508 = vor.u32 %v431, %v507
    %v509 = vrot.slane %v470, 1
    %v510 = vor.u32 %v435, %v509
    %v511 = vrot.slane %v473, 1
    %v512 = vor.u32 %v439, %v511
    %v513 = vrot.slane %v476, 1
    %v514 = vor.u32 %v443, %v513
    %v515 = vrot.slane %v479, 1
    %v516 = vor.u32 %v447, %v515
    %vm533 = vcmask 1047552
    %vm534 = vsmask.f32 7424
    %vm535 = vmand %vm533, %vm534
    %v536 = vsel %vm535, %v502, %v501
    %v537 = vsel %vm535, %v504, %v503
    %v538 = vsel %vm535, %v506, %v505
    %v539 = vsel %vm535, %v508, %v507
    %v540 = vsel %vm535, %v510, %v509
    %v541 = vsel %vm535, %v512, %v511
    %v542 = vsel %vm535, %v514, %v513
    %v543 = vsel %vm535, %v516, %v515
    %v544 = vrot.slane %v288, 1
    %v545 = vrot.slane %v289, 1
    %v546 = vrot.slane %v290, 1
    %v547 = vrot.slane %v291, 1
    %v548 = vrot.slane %v292, 1
    %v549 = vrot.slane %v293, 1
    %v550 = vrot.slane %v294, 1
    %v551 = vrot.slane %v295, 1
    %vm552 = vcmask 1046528
    %v554 = vsel %vm552, %v544, %v544
    %v557 = vsel %vm552, %v545, %v545
    %v560 = vsel %vm552, %v546, %v546
    %v563 = vsel %vm552, %v547, %v547
    %v566 = vsel %vm552, %v548, %v548
    %v569 = vsel %vm552, %v549, %v549
    %v572 = vsel %vm552, %v550, %v550
    %v575 = vsel %vm552, %v551, %v551
    %v578 = vlaneseq
    %v579 = vshrl.u32 %v578, 7
    %v580 = vsub.s32 0, %v579
    %v581 = vrot.slane %v376, %v580
    %v582 = vlaneseq
    %v583 = vshrl.u32 %v582, 7
    %v584 = vsub.s32 1, %v583
    %v585 = vrot.slane %v376, %v584
    %v668 = vunpack.c.l.b16 %v296
    %v669 = vunpack.c.h.b16 %v296
    %v670 = vunpack.c.l.b16 %v297
    %v671 = vunpack.c.h.b16 %v297
    %v672 = vunpack.c.l.b16 %v298
    %v673 = vunpack.c.h.b16 %v298
    %v674 = vunpack.c.l.b16 %v299
    %v675 = vunpack.c.h.b16 %v299
    %v676 = vunpack.c.l.b16 %v300
    %v677 = vunpack.c.h.b16 %v300
    %v678 = vunpack.c.l.b16 %v301
    %v679 = vunpack.c.h.b16 %v301
    %v680 = vunpack.c.l.b16 %v302
    %v681 = vunpack.c.h.b16 %v302
    %v682 = vunpack.c.l.b16 %v303
    %v683 = vunpack.c.h.b16 %v303
    %v684 = vunpack.c.l.b16 %v304
    %v685 = vunpack.c.h.b16 %v304
    %v686 = vunpack.c.l.b16 %v305
    %v687 = vunpack.c.h.b16 %v305
    %v688 = vunpack.c.l.b16 %v306
    %v689 = vunpack.c.h.b16 %v306
    %v690 = vunpack.c.l.b16 %v307
    %v691 = vunpack.c.h.b16 %v307
    %v692 = vunpack.c.l.b16 %v308
    %v693 = vunpack.c.h.b16 %v308
    %v694 = vunpack.c.l.b16 %v309
    %v695 = vunpack.c.h.b16 %v309
    %v696 = vunpack.c.l.b16 %v310
    %v697 = vunpack.c.h.b16 %v310
    %v698 = vunpack.c.l.b16 %v311
    %v699 = vunpack.c.h.b16 %v311
    %v700 = vunpack.c.l.b16 %v312
    %v701 = vunpack.c.h.b16 %v312
    %v702 = vunpack.c.l.b16 %v313
    %v703 = vunpack.c.h.b16 %v313
    %v704 = vunpack.c.l.b16 %v314
    %v705 = vunpack.c.h.b16 %v314
    %v706 = vunpack.c.l.b16 %v315
    %v707 = vunpack.c.h.b16 %v315
    %v708 = vunpack.c.l.b16 %v316
    %v709 = vunpack.c.h.b16 %v316
    %v710 = vunpack.c.l.b16 %v317
    %v711 = vunpack.c.h.b16 %v317
    %v712 = vunpack.c.l.b16 %v318
    %v713 = vunpack.c.h.b16 %v318
    %v714 = vunpack.c.l.b16 %v319
    %v715 = vunpack.c.h.b16 %v319
    %v716 = vunpack.c.l.b16 %v320
    %v717 = vunpack.c.h.b16 %v320
    %v718 = vunpack.c.l.b16 %v321
    %v719 = vunpack.c.h.b16 %v321
    %v720 = vunpack.c.l.b16 %v322
    %v721 = vunpack.c.h.b16 %v322
    %v722 = vunpack.c.l.b16 %v323
    %v723 = vunpack.c.h.b16 %v323
    %v724 = vunpack.c.l.b16 %v324
    %v725 = vunpack.c.h.b16 %v324
    %v726 = vunpack.c.l.b16 %v325
    %v727 = vunpack.c.h.b16 %v325
    %v728 = vunpack.c.l.b16 %v326
    %v729 = vunpack.c.h.b16 %v326
    %v730 = vunpack.c.l.b16 %v327
    %v731 = vunpack.c.h.b16 %v327
    %v732 = vunpack.c.l.b16 %v328
    %v733 = vunpack.c.h.b16 %v328
    %v734 = vunpack.c.l.b16 %v329
    %v735 = vunpack.c.h.b16 %v329
    %v736 = vunpack.c.l.b16 %v330
    %v737 = vunpack.c.h.b16 %v330
    %v738 = vunpack.c.l.b16 %v331
    %v739 = vunpack.c.h.b16 %v331
    %v740 = vunpack.c.l.b16 %v332
    %v741 = vunpack.c.h.b16 %v332
    %v742 = vunpack.c.l.b16 %v333
    %v743 = vunpack.c.h.b16 %v333
    %v744 = vunpack.c.l.b16 %v334
    %v745 = vunpack.c.h.b16 %v334
    %v746 = vunpack.c.l.b16 %v335
    %v747 = vunpack.c.h.b16 %v335
    %v748 = vunpack.c.l.b16 %v336
    %v749 = vunpack.c.h.b16 %v336
    %v750 = vunpack.c.l.b16 %v337
    %v751 = vunpack.c.h.b16 %v337
    %v752 = vunpack.c.l.b16 %v338
    %v753 = vunpack.c.h.b16 %v338
    %v754 = vunpack.c.l.b16 %v339
    %v755 = vunpack.c.h.b16 %v339
    %v756 = vunpack.c.l.b16 %v340
    %v757 = vunpack.c.h.b16 %v340
    %v758 = vunpack.c.l.b16 %v341
    %v759 = vunpack.c.h.b16 %v341
    %v760 = vunpack.c.l.b16 %v342
    %v761 = vunpack.c.h.b16 %v342
    %v762 = vunpack.c.l.b16 %v343
    %v763 = vunpack.c.h.b16 %v343
    %v764 = vunpack.c.l.b16 %v344
    %v765 = vunpack.c.h.b16 %v344
    %v766 = vunpack.c.l.b16 %v345
    %v767 = vunpack.c.h.b16 %v345
    %v768 = vunpack.c.l.b16 %v346
    %v769 = vunpack.c.h.b16 %v346
    %v770 = vunpack.c.l.b16 %v347
    %v771 = vunpack.c.h.b16 %v347
    %v772 = vunpack.c.l.b16 %v348
    %v773 = vunpack.c.h.b16 %v348
    %v774 = vunpack.c.l.b16 %v349
    %v775 = vunpack.c.h.b16 %v349
    %v776 = vunpack.c.l.b16 %v350
    %v777 = vunpack.c.h.b16 %v350
    %v778 = vunpack.c.l.b16 %v351
    %v779 = vunpack.c.h.b16 %v351
    %v780 = vunpack.c.l.b16 %v352
    %v781 = vunpack.c.h.b16 %v352
    %v782 = vunpack.c.l.b16 %v353
    %v783 = vunpack.c.h.b16 %v353
    %v784 = vunpack.c.l.b16 %v354
    %v785 = vunpack.c.h.b16 %v354
    %v786 = vunpack.c.l.b16 %v355
    %v787 = vunpack.c.h.b16 %v355
    %v788 = vunpack.c.l.b16 %v356
    %v789 = vunpack.c.h.b16 %v356
    %v790 = vunpack.c.l.b16 %v357
    %v791 = vunpack.c.h.b16 %v357
    %v792 = vunpack.c.l.b16 %v358
    %v793 = vunpack.c.h.b16 %v358
    %v794 = vunpack.c.l.b16 %v359
    %v795 = vunpack.c.h.b16 %v359
    %v796 = vunpack.c.l.b16 %v360
    %v797 = vunpack.c.h.b16 %v360
    %v798 = vunpack.c.l.b16 %v361
    %v799 = vunpack.c.h.b16 %v361
    %v800 = vunpack.c.l.b16 %v362
    %v801 = vunpack.c.h.b16 %v362
    %v802 = vunpack.c.l.b16 %v363
    %v803 = vunpack.c.h.b16 %v363
    %v804 = vunpack.c.l.b16 %v364
    %v805 = vunpack.c.h.b16 %v364
    %v806 = vunpack.c.l.b16 %v365
    %v807 = vunpack.c.h.b16 %v365
    %v808 = vunpack.c.l.b16 %v366
    %v809 = vunpack.c.h.b16 %v366
    %v810 = vunpack.c.l.b16 %v367
    %v811 = vunpack.c.h.b16 %v367
    %v812 = vunpack.c.l.b16 %v368
    %v813 = vunpack.c.h.b16 %v368
    %v814 = vunpack.c.l.b16 %v369
    %v815 = vunpack.c.h.b16 %v369
    %v816 = vunpack.c.l.b16 %v370
    %v817 = vunpack.c.h.b16 %v370
    %v818 = vunpack.c.l.b16 %v371
    %v819 = vunpack.c.h.b16 %v371
    %v820 = vunpack.c.l.b16 %v372
    %v821 = vunpack.c.h.b16 %v372
    %v822 = vunpack.c.l.b16 %v373
    %v823 = vunpack.c.h.b16 %v373
    %v824 = vunpack.c.l.b16 %v374
    %v825 = vunpack.c.h.b16 %v374
    %v826 = vunpack.c.l.b16 %v375
    %v827 = vunpack.c.h.b16 %v375
    %v828 = vpack.c.b16 %v670, %v668
    %v829 = vpack.c.b16 %v671, %v669
    %v830 = vpack.c.b16 %v674, %v672
    %v831 = vpack.c.b16 %v675, %v673
    %v832 = vpack.c.b16 %v678, %v676
    %v833 = vpack.c.b16 %v679, %v677
    %v834 = vpack.c.b16 %v682, %v680
    %v835 = vpack.c.b16 %v683, %v681
    %v836 = vpack.c.b16 %v686, %v684
    %v837 = vpack.c.b16 %v687, %v685
    %v838 = vpack.c.b16 %v690, %v688
    %v839 = vpack.c.b16 %v691, %v689
    %v840 = vpack.c.b16 %v694, %v692
    %v841 = vpack.c.b16 %v695, %v693
    %v842 = vpack.c.b16 %v698, %v696
    %v843 = vpack.c.b16 %v699, %v697
    %v844 = vpack.c.b16 %v702, %v700
    %v845 = vpack.c.b16 %v703, %v701
    %v846 = vpack.c.b16 %v706, %v704
    %v847 = vpack.c.b16 %v707, %v705
    %v848 = vpack.c.b16 %v710, %v708
    %v849 = vpack.c.b16 %v711, %v709
    %v850 = vpack.c.b16 %v714, %v712
    %v851 = vpack.c.b16 %v715, %v713
    %v852 = vpack.c.b16 %v718, %v716
    %v853 = vpack.c.b16 %v719, %v717
    %v854 = vpack.c.b16 %v722, %v720
    %v855 = vpack.c.b16 %v723, %v721
    %v856 = vpack.c.b16 %v726, %v724
    %v857 = vpack.c.b16 %v727, %v725
    %v858 = vpack.c.b16 %v730, %v728
    %v859 = vpack.c.b16 %v731, %v729
    %v860 = vpack.c.b16 %v734, %v732
    %v861 = vpack.c.b16 %v735, %v733
    %v862 = vpack.c.b16 %v738, %v736
    %v863 = vpack.c.b16 %v739, %v737
    %v864 = vpack.c.b16 %v742, %v740
    %v865 = vpack.c.b16 %v743, %v741
    %v866 = vpack.c.b16 %v746, %v744
    %v867 = vpack.c.b16 %v747, %v745
    %v868 = vpack.c.b16 %v750, %v748
    %v869 = vpack.c.b16 %v751, %v749
    %v870 = vpack.c.b16 %v754, %v752
    %v871 = vpack.c.b16 %v755, %v753
    %v872 = vpack.c.b16 %v758, %v756
    %v873 = vpack.c.b16 %v759, %v757
    %v874 = vpack.c.b16 %v762, %v760
    %v875 = vpack.c.b16 %v763, %v761
    %v876 = vpack.c.b16 %v766, %v764
    %v877 = vpack.c.b16 %v767, %v765
    %v878 = vpack.c.b16 %v770, %v768
    %v879 = vpack.c.b16 %v771, %v769
    %v880 = vpack.c.b16 %v774, %v772
    %v881 = vpack.c.b16 %v775, %v773
    %v882 = vpack.c.b16 %v778, %v776
    %v883 = vpack.c.b16 %v779, %v777
    %v884 = vpack.c.b16 %v782, %v780
    %v885 = vpack.c.b16 %v783, %v781
    %v886 = vpack.c.b16 %v786, %v784
    %v887 = vpack.c.b16 %v787, %v785
    %v888 = vpack.c.b16 %v790, %v788
    %v889 = vpack.c.b16 %v791, %v789
    %v890 = vpack.c.b16 %v794, %v792
    %v891 = vpack.c.b16 %v795, %v793
    %v892 = vpack.c.b16 %v798, %v796
    %v893 = vpack.c.b16 %v799, %v797
    %v894 = vpack.c.b16 %v802, %v800
    %v895 = vpack.c.b16 %v803, %v801
    %v896 = vpack.c.b16 %v806, %v804
    %v897 = vpack.c.b16 %v807, %v805
    %v898 = vpack.c.b16 %v810, %v808
    %v899 = vpack.c.b16 %v811, %v809
    %v900 = vpack.c.b16 %v814, %v812
    %v901 = vpack.c.b16 %v815, %v813
    %v902 = vpack.c.b16 %v818, %v816
    %v903 = vpack.c.b16 %v819, %v817
    %v904 = vpack.c.b16 %v822, %v820
    %v905 = vpack.c.b16 %v823, %v821
    %v906 = vpack.c.b16 %v826, %v824
    %v907 = vpack.c.b16 %v827, %v825
    %988 = vmatprep.subr.bf16.mxu0 %v829
    %989 = vmatpush1.bf16.msra.mxu0 %v828
    %990 = vmatprep.subr.bf16.mxu0 %v831
    %991 = vmatpush1.bf16.msra.mxu0 %v830
    %992 = vmatprep.subr.bf16.mxu0 %v833
    %993 = vmatpush1.bf16.msra.mxu0 %v832
    %994 = vmatprep.subr.bf16.mxu0 %v835
    %995 = vmatpush1.bf16.msra.mxu0 %v834
    %996 = vmatprep.subr.bf16.mxu0 %v837
    %997 = vmatpush1.bf16.msra.mxu0 %v836
    %998 = vmatprep.subr.bf16.mxu0 %v839
    %999 = vmatpush1.bf16.msra.mxu0 %v838
    %1000 = vmatprep.subr.bf16.mxu0 %v841
    %1001 = vmatpush1.bf16.msra.mxu0 %v840
    %1002 = vmatprep.subr.bf16.mxu0 %v843
    %1003 = vmatpush1.bf16.msra.mxu0 %v842
    %1004 = vmatprep.subr.bf16.mxu0 %v845
    %1005 = vmatpush1.bf16.msra.mxu0 %v844
    %1006 = vmatprep.subr.bf16.mxu0 %v847
    %1007 = vmatpush1.bf16.msra.mxu0 %v846
    %1008 = vmatprep.subr.bf16.mxu0 %v849
    %1009 = vmatpush1.bf16.msra.mxu0 %v848
    %1010 = vmatprep.subr.bf16.mxu0 %v851
    %1011 = vmatpush1.bf16.msra.mxu0 %v850
    %1012 = vmatprep.subr.bf16.mxu0 %v853
    %1013 = vmatpush1.bf16.msra.mxu0 %v852
    %1014 = vmatprep.subr.bf16.mxu0 %v855
    %1015 = vmatpush1.bf16.msra.mxu0 %v854
    %1016 = vmatprep.subr.bf16.mxu0 %v857
    %1017 = vmatpush1.bf16.msra.mxu0 %v856
    %1018 = vmatprep.subr.bf16.mxu0 %v859
    %1019 = vmatpush1.bf16.msra.mxu0 %v858
    %1020 = vmatprep.mubr.bf16.mxu0 %v493
    %1021 = vmatmul.mubr.bf16.gmra.mrb[0].mxu0 %v395
    %v1022 = vpop.f32.mrb[0].mxu0
    %v1023 = vadd.f32 %v581, %v1022
    %v1024 = vpop.f32.mrb[0].mxu0
    %v1025 = vadd.f32 %v585, %v1024
    %v1026 = vpop.f32.mrb[0].mxu0
    %v1027 = vadd.f32 %v581, %v1026
    %v1028 = vpop.f32.mrb[0].mxu0
    %v1029 = vadd.f32 %v585, %v1028
    %1030 = vmatprep.mubr.bf16.mxu0 %v494
    %1031 = vmatmul.mubr.bf16.gmra.mrb[0].mxu0 %v398
    %v1032 = vpop.f32.mrb[0].mxu0
    %v1033 = vadd.f32 %v581, %v1032
    %v1034 = vpop.f32.mrb[0].mxu0
    %v1035 = vadd.f32 %v585, %v1034
    %v1036 = vpop.f32.mrb[0].mxu0
    %v1037 = vadd.f32 %v581, %v1036
    %v1038 = vpop.f32.mrb[0].mxu0
    %v1039 = vadd.f32 %v585, %v1038
    %1040 = vmatprep.mubr.bf16.mxu0 %v495
    %1041 = vmatmul.mubr.bf16.gmra.mrb[0].mxu0 %v401
    %v1042 = vpop.f32.mrb[0].mxu0
    %v1043 = vadd.f32 %v581, %v1042
    %v1044 = vpop.f32.mrb[0].mxu0
    %v1045 = vadd.f32 %v585, %v1044
    %v1046 = vpop.f32.mrb[0].mxu0
    %v1047 = vadd.f32 %v581, %v1046
    %v1048 = vpop.f32.mrb[0].mxu0
    %v1049 = vadd.f32 %v585, %v1048
    %1050 = vmatprep.mubr.bf16.mxu0 %v496
    %1051 = vmatmul.mubr.bf16.gmra.mrb[0].mxu0 %v404
    %v1052 = vpop.f32.mrb[0].mxu0
    %v1053 = vadd.f32 %v581, %v1052
    %v1054 = vpop.f32.mrb[0].mxu0
    %v1055 = vadd.f32 %v585, %v1054
    %v1056 = vpop.f32.mrb[0].mxu0
    %v1057 = vadd.f32 %v581, %v1056
    %v1058 = vpop.f32.mrb[0].mxu0
    %v1059 = vadd.f32 %v585, %v1058
    %1060 = vmatprep.mubr.bf16.mxu0 %v497
    %1061 = vmatmul.mubr.bf16.gmra.mrb[0].mxu0 %v407
    %v1062 = vpop.f32.mrb[0].mxu0
    %v1063 = vadd.f32 %v581, %v1062
    %v1064 = vpop.f32.mrb[0].mxu0
    %v1065 = vadd.f32 %v585, %v1064
    %v1066 = vpop.f32.mrb[0].mxu0
    %v1067 = vadd.f32 %v581, %v1066
    %v1068 = vpop.f32.mrb[0].mxu0
    %v1069 = vadd.f32 %v585, %v1068
    %1070 = vmatprep.mubr.bf16.mxu0 %v498
    %1071 = vmatmul.mubr.bf16.gmra.mrb[0].mxu0 %v410
    %v1072 = vpop.f32.mrb[0].mxu0
    %v1073 = vadd.f32 %v581, %v1072
    %v1074 = vpop.f32.mrb[0].mxu0
    %v1075 = vadd.f32 %v585, %v1074
    %v1076 = vpop.f32.mrb[0].mxu0
    %v1077 = vadd.f32 %v581, %v1076
    %v1078 = vpop.f32.mrb[0].mxu0
    %v1079 = vadd.f32 %v585, %v1078
    %1080 = vmatprep.mubr.bf16.mxu0 %v499
    %1081 = vmatmul.mubr.bf16.gmra.mrb[0].mxu0 %v413
    %v1082 = vpop.f32.mrb[0].mxu0
    %v1083 = vadd.f32 %v581, %v1082
    %v1084 = vpop.f32.mrb[0].mxu0
    %v1085 = vadd.f32 %v585, %v1084
    %v1086 = vpop.f32.mrb[0].mxu0
    %v1087 = vadd.f32 %v581, %v1086
    %v1088 = vpop.f32.mrb[0].mxu0
    %v1089 = vadd.f32 %v585, %v1088
    %1090 = vmatprep.mubr.bf16.mxu0 %v500
    %1091 = vmatmul.mubr.bf16.gmra.mrb[0].mxu0 %v416
    %v1092 = vpop.f32.mrb[0].mxu0
    %v1093 = vadd.f32 %v581, %v1092
    %v1094 = vpop.f32.mrb[0].mxu0
    %v1095 = vadd.f32 %v585, %v1094
    %v1096 = vpop.f32.mrb[0].mxu0
    %v1097 = vadd.f32 %v581, %v1096
    %v1098 = vpop.f32.mrb[0].mxu0
    %v1099 = vadd.f32 %v585, %v1098
    %1100 = vdwg.mxu0
    %1101 = vmatprep.subr.bf16.mxu0 %v861
    %1102 = vmatpush1.bf16.msra.mxu0 %v860
    %1103 = vmatprep.subr.bf16.mxu0 %v863
    %1104 = vmatpush1.bf16.msra.mxu0 %v862
    %1105 = vmatprep.subr.bf16.mxu0 %v865
    %1106 = vmatpush1.bf16.msra.mxu0 %v864
    %1107 = vmatprep.subr.bf16.mxu0 %v867
    %1108 = vmatpush1.bf16.msra.mxu0 %v866
    %1109 = vmatprep.subr.bf16.mxu0 %v869
    %1110 = vmatpush1.bf16.msra.mxu0 %v868
    %1111 = vmatprep.subr.bf16.mxu0 %v871
    %1112 = vmatpush1.bf16.msra.mxu0 %v870
    %1113 = vmatprep.subr.bf16.mxu0 %v873
    %1114 = vmatpush1.bf16.msra.mxu0 %v872
    %1115 = vmatprep.subr.bf16.mxu0 %v875
    %1116 = vmatpush1.bf16.msra.mxu0 %v874
    %1117 = vmatprep.subr.bf16.mxu0 %v877
    %1118 = vmatpush1.bf16.msra.mxu0 %v876
    %1119 = vmatprep.subr.bf16.mxu0 %v879
    %1120 = vmatpush1.bf16.msra.mxu0 %v878
    %1121 = vmatprep.subr.bf16.mxu0 %v881
    %1122 = vmatpush1.bf16.msra.mxu0 %v880
    %1123 = vmatprep.subr.bf16.mxu0 %v883
    %1124 = vmatpush1.bf16.msra.mxu0 %v882
    %1125 = vmatprep.subr.bf16.mxu0 %v885
    %1126 = vmatpush1.bf16.msra.mxu0 %v884
    %1127 = vmatprep.subr.bf16.mxu0 %v887
    %1128 = vmatpush1.bf16.msra.mxu0 %v886
    %1129 = vmatprep.subr.bf16.mxu0 %v889
    %1130 = vmatpush1.bf16.msra.mxu0 %v888
    %1131 = vmatprep.subr.bf16.mxu0 %v891
    %1132 = vmatpush1.bf16.msra.mxu0 %v890
    %1133 = vmatprep.mubr.bf16.mxu0 %v536
    %1134 = vmatmul.mubr.bf16.gmra.mrb[0].mxu0 %v288
    %v1135 = vpop.f32.mrb[0].mxu0
    %v1136 = vadd.f32 %v1023, %v1135
    %v1137 = vpop.f32.mrb[0].mxu0
    %v1138 = vadd.f32 %v1025, %v1137
    %v1139 = vpop.f32.mrb[0].mxu0
    %v1140 = vadd.f32 %v1027, %v1139
    %v1141 = vpop.f32.mrb[0].mxu0
    %v1142 = vadd.f32 %v1029, %v1141
    %1143 = vmatprep.mubr.bf16.mxu0 %v537
    %1144 = vmatmul.mubr.bf16.gmra.mrb[0].mxu0 %v289
    %v1145 = vpop.f32.mrb[0].mxu0
    %v1146 = vadd.f32 %v1033, %v1145
    %v1147 = vpop.f32.mrb[0].mxu0
    %v1148 = vadd.f32 %v1035, %v1147
    %v1149 = vpop.f32.mrb[0].mxu0
    %v1150 = vadd.f32 %v1037, %v1149
    %v1151 = vpop.f32.mrb[0].mxu0
    %v1152 = vadd.f32 %v1039, %v1151
    %1153 = vmatprep.mubr.bf16.mxu0 %v538
    %1154 = vmatmul.mubr.bf16.gmra.mrb[0].mxu0 %v290
    %v1155 = vpop.f32.mrb[0].mxu0
    %v1156 = vadd.f32 %v1043, %v1155
    %v1157 = vpop.f32.mrb[0].mxu0
    %v1158 = vadd.f32 %v1045, %v1157
    %v1159 = vpop.f32.mrb[0].mxu0
    %v1160 = vadd.f32 %v1047, %v1159
    %v1161 = vpop.f32.mrb[0].mxu0
    %v1162 = vadd.f32 %v1049, %v1161
    %1163 = vmatprep.mubr.bf16.mxu0 %v539
    %1164 = vmatmul.mubr.bf16.gmra.mrb[0].mxu0 %v291
    %v1165 = vpop.f32.mrb[0].mxu0
    %v1166 = vadd.f32 %v1053, %v1165
    %v1167 = vpop.f32.mrb[0].mxu0
    %v1168 = vadd.f32 %v1055, %v1167
    %v1169 = vpop.f32.mrb[0].mxu0
    %v1170 = vadd.f32 %v1057, %v1169
    %v1171 = vpop.f32.mrb[0].mxu0
    %v1172 = vadd.f32 %v1059, %v1171
    %1173 = vmatprep.mubr.bf16.mxu0 %v540
    %1174 = vmatmul.mubr.bf16.gmra.mrb[0].mxu0 %v292
    %v1175 = vpop.f32.mrb[0].mxu0
    %v1176 = vadd.f32 %v1063, %v1175
    %v1177 = vpop.f32.mrb[0].mxu0
    %v1178 = vadd.f32 %v1065, %v1177
    %v1179 = vpop.f32.mrb[0].mxu0
    %v1180 = vadd.f32 %v1067, %v1179
    %v1181 = vpop.f32.mrb[0].mxu0
    %v1182 = vadd.f32 %v1069, %v1181
    %1183 = vmatprep.mubr.bf16.mxu0 %v541
    %1184 = vmatmul.mubr.bf16.gmra.mrb[0].mxu0 %v293
    %v1185 = vpop.f32.mrb[0].mxu0
    %v1186 = vadd.f32 %v1073, %v1185
    %v1187 = vpop.f32.mrb[0].mxu0
    %v1188 = vadd.f32 %v1075, %v1187
    %v1189 = vpop.f32.mrb[0].mxu0
    %v1190 = vadd.f32 %v1077, %v1189
    %v1191 = vpop.f32.mrb[0].mxu0
    %v1192 = vadd.f32 %v1079, %v1191
    %1193 = vmatprep.mubr.bf16.mxu0 %v542
    %1194 = vmatmul.mubr.bf16.gmra.mrb[0].mxu0 %v294
    %v1195 = vpop.f32.mrb[0].mxu0
    %v1196 = vadd.f32 %v1083, %v1195
    %v1197 = vpop.f32.mrb[0].mxu0
    %v1198 = vadd.f32 %v1085, %v1197
    %v1199 = vpop.f32.mrb[0].mxu0
    %v1200 = vadd.f32 %v1087, %v1199
    %v1201 = vpop.f32.mrb[0].mxu0
    %v1202 = vadd.f32 %v1089, %v1201
    %1203 = vmatprep.mubr.bf16.mxu0 %v543
    %1204 = vmatmul.mubr.bf16.gmra.mrb[0].mxu0 %v295
    %v1205 = vpop.f32.mrb[0].mxu0
    %v1206 = vadd.f32 %v1093, %v1205
    %v1207 = vpop.f32.mrb[0].mxu0
    %v1208 = vadd.f32 %v1095, %v1207
    %v1209 = vpop.f32.mrb[0].mxu0
    %v1210 = vadd.f32 %v1097, %v1209
    %v1211 = vpop.f32.mrb[0].mxu0
    %v1212 = vadd.f32 %v1099, %v1211
    %1213 = vdwg.mxu0
    %1214 = vmatprep.subr.bf16.mxu0 %v893
    %1215 = vmatpush1.bf16.msra.mxu0 %v892
    %1216 = vmatprep.subr.bf16.mxu0 %v895
    %1217 = vmatpush1.bf16.msra.mxu0 %v894
    %1218 = vmatprep.subr.bf16.mxu0 %v897
    %1219 = vmatpush1.bf16.msra.mxu0 %v896
    %1220 = vmatprep.subr.bf16.mxu0 %v899
    %1221 = vmatpush1.bf16.msra.mxu0 %v898
    %1222 = vmatprep.subr.bf16.mxu0 %v901
    %1223 = vmatpush1.bf16.msra.mxu0 %v900
    %1224 = vmatprep.subr.bf16.mxu0 %v903
    %1225 = vmatpush1.bf16.msra.mxu0 %v902
    %1226 = vmatprep.subr.bf16.mxu0 %v905
    %1227 = vmatpush1.bf16.msra.mxu0 %v904
    %1228 = vmatprep.subr.bf16.mxu0 %v907
    %1229 = vmatpush1.bf16.msra.mxu0 %v906
    %1230 = vmatprep.subr.bf16.mxu0 0
    %1231 = vmatpush1.bf16.msra.mxu0 0
    %1232 = vmatprep.subr.bf16.mxu0 0
    %1233 = vmatpush1.bf16.msra.mxu0 0
    %1234 = vmatprep.subr.bf16.mxu0 0
    %1235 = vmatpush1.bf16.msra.mxu0 0
    %1236 = vmatprep.subr.bf16.mxu0 0
    %1237 = vmatpush1.bf16.msra.mxu0 0
    %1238 = vmatprep.subr.bf16.mxu0 0
    %1239 = vmatpush1.bf16.msra.mxu0 0
    %1240 = vmatprep.subr.bf16.mxu0 0
    %1241 = vmatpush1.bf16.msra.mxu0 0
    %1242 = vmatprep.subr.bf16.mxu0 0
    %1243 = vmatpush1.bf16.msra.mxu0 0
    %1244 = vmatprep.subr.bf16.mxu0 0
    %1245 = vmatpush1.bf16.msra.mxu0 0
    %1246 = vmatprep.mubr.bf16.mxu0 0
    %1247 = vmatmul.mubr.bf16.gmra.mrb[0].mxu0 %v554
    %v1248 = vpop.f32.mrb[0].mxu0
    %v1249 = vadd.f32 %v1136, %v1248
    %v1250 = vpop.f32.mrb[0].mxu0
    %v1251 = vadd.f32 %v1138, %v1250
    %v1252 = vpop.f32.mrb[0].mxu0
    %v1253 = vadd.f32 %v1140, %v1252
    %v1254 = vpop.f32.mrb[0].mxu0
    %v1255 = vadd.f32 %v1142, %v1254
    %1256 = vmatprep.mubr.bf16.mxu0 0
    %1257 = vmatmul.mubr.bf16.gmra.mrb[0].mxu0 %v557
    %v1258 = vpop.f32.mrb[0].mxu0
    %v1259 = vadd.f32 %v1146, %v1258
    %v1260 = vpop.f32.mrb[0].mxu0
    %v1261 = vadd.f32 %v1148, %v1260
    %v1262 = vpop.f32.mrb[0].mxu0
    %v1263 = vadd.f32 %v1150, %v1262
    %v1264 = vpop.f32.mrb[0].mxu0
    %v1265 = vadd.f32 %v1152, %v1264
    %1266 = vmatprep.mubr.bf16.mxu0 0
    %1267 = vmatmul.mubr.bf16.gmra.mrb[0].mxu0 %v560
    %v1268 = vpop.f32.mrb[0].mxu0
    %v1269 = vadd.f32 %v1156, %v1268
    %v1270 = vpop.f32.mrb[0].mxu0
    %v1271 = vadd.f32 %v1158, %v1270
    %v1272 = vpop.f32.mrb[0].mxu0
    %v1273 = vadd.f32 %v1160, %v1272
    %v1274 = vpop.f32.mrb[0].mxu0
    %v1275 = vadd.f32 %v1162, %v1274
    %1276 = vmatprep.mubr.bf16.mxu0 0
    %1277 = vmatmul.mubr.bf16.gmra.mrb[0].mxu0 %v563
    %v1278 = vpop.f32.mrb[0].mxu0
    %v1279 = vadd.f32 %v1166, %v1278
    %v1280 = vpop.f32.mrb[0].mxu0
    %v1281 = vadd.f32 %v1168, %v1280
    %v1282 = vpop.f32.mrb[0].mxu0
    %v1283 = vadd.f32 %v1170, %v1282
    %v1284 = vpop.f32.mrb[0].mxu0
    %v1285 = vadd.f32 %v1172, %v1284
    %1286 = vmatprep.mubr.bf16.mxu0 0
    %1287 = vmatmul.mubr.bf16.gmra.mrb[0].mxu0 %v566
    %v1288 = vpop.f32.mrb[0].mxu0
    %v1289 = vadd.f32 %v1176, %v1288
    %v1290 = vpop.f32.mrb[0].mxu0
    %v1291 = vadd.f32 %v1178, %v1290
    %v1292 = vpop.f32.mrb[0].mxu0
    %v1293 = vadd.f32 %v1180, %v1292
    %v1294 = vpop.f32.mrb[0].mxu0
    %v1295 = vadd.f32 %v1182, %v1294
    %1296 = vmatprep.mubr.bf16.mxu0 0
    %1297 = vmatmul.mubr.bf16.gmra.mrb[0].mxu0 %v569
    %v1298 = vpop.f32.mrb[0].mxu0
    %v1299 = vadd.f32 %v1186, %v1298
    %v1300 = vpop.f32.mrb[0].mxu0
    %v1301 = vadd.f32 %v1188, %v1300
    %v1302 = vpop.f32.mrb[0].mxu0
    %v1303 = vadd.f32 %v1190, %v1302
    %v1304 = vpop.f32.mrb[0].mxu0
    %v1305 = vadd.f32 %v1192, %v1304
    %1306 = vmatprep.mubr.bf16.mxu0 0
    %1307 = vmatmul.mubr.bf16.gmra.mrb[0].mxu0 %v572
    %v1308 = vpop.f32.mrb[0].mxu0
    %v1309 = vadd.f32 %v1196, %v1308
    %v1310 = vpop.f32.mrb[0].mxu0
    %v1311 = vadd.f32 %v1198, %v1310
    %v1312 = vpop.f32.mrb[0].mxu0
    %v1313 = vadd.f32 %v1200, %v1312
    %v1314 = vpop.f32.mrb[0].mxu0
    %v1315 = vadd.f32 %v1202, %v1314
    %1316 = vmatprep.mubr.bf16.mxu0 0
    %1317 = vmatmul.mubr.bf16.gmra.mrb[0].mxu0 %v575
    %v1318 = vpop.f32.mrb[0].mxu0
    %v1319 = vadd.f32 %v1206, %v1318
    %v1320 = vpop.f32.mrb[0].mxu0
    %v1321 = vadd.f32 %v1208, %v1320
    %v1322 = vpop.f32.mrb[0].mxu0
    %v1323 = vadd.f32 %v1210, %v1322
    %v1324 = vpop.f32.mrb[0].mxu0
    %v1325 = vadd.f32 %v1212, %v1324
    %1326 = vdwg.mxu0
    %v1327 = vmax.f32 %v1249, 0.0
    %v1328 = vmax.f32 %v1251, 0.0
    %v1329 = vmax.f32 %v1253, 0.0
    %v1330 = vmax.f32 %v1255, 0.0
    %v1331 = vmax.f32 %v1259, 0.0
    %v1332 = vmax.f32 %v1261, 0.0
    %v1333 = vmax.f32 %v1263, 0.0
    %v1334 = vmax.f32 %v1265, 0.0
    %v1335 = vmax.f32 %v1269, 0.0
    %v1336 = vmax.f32 %v1271, 0.0
    %v1337 = vmax.f32 %v1273, 0.0
    %v1338 = vmax.f32 %v1275, 0.0
    %v1339 = vmax.f32 %v1279, 0.0
    %v1340 = vmax.f32 %v1281, 0.0
    %v1341 = vmax.f32 %v1283, 0.0
    %v1342 = vmax.f32 %v1285, 0.0
    %v1343 = vmax.f32 %v1289, 0.0
    %v1344 = vmax.f32 %v1291, 0.0
    %v1345 = vmax.f32 %v1293, 0.0
    %v1346 = vmax.f32 %v1295, 0.0
    %v1347 = vmax.f32 %v1299, 0.0
    %v1348 = vmax.f32 %v1301, 0.0
    %v1349 = vmax.f32 %v1303, 0.0
    %v1350 = vmax.f32 %v1305, 0.0
    %v1351 = vmax.f32 %v1309, 0.0
    %v1352 = vmax.f32 %v1311, 0.0
    %v1353 = vmax.f32 %v1313, 0.0
    %v1354 = vmax.f32 %v1315, 0.0
    %v1355 = vmax.f32 %v1319, 0.0
    %v1356 = vmax.f32 %v1321, 0.0
    %v1357 = vmax.f32 %v1323, 0.0
    %v1358 = vmax.f32 %v1325, 0.0
    %v1359 = vpack.c.bf16 %v1329, %v1327
    %v1360 = vpack.c.bf16 %v1330, %v1328
    %v1361 = vpack.c.bf16 %v1333, %v1331
    %v1362 = vpack.c.bf16 %v1334, %v1332
    %v1363 = vpack.c.bf16 %v1337, %v1335
    %v1364 = vpack.c.bf16 %v1338, %v1336
    %v1365 = vpack.c.bf16 %v1341, %v1339
    %v1366 = vpack.c.bf16 %v1342, %v1340
    %v1367 = vpack.c.bf16 %v1345, %v1343
    %v1368 = vpack.c.bf16 %v1346, %v1344
    %v1369 = vpack.c.bf16 %v1349, %v1347
    %v1370 = vpack.c.bf16 %v1350, %v1348
    %v1371 = vpack.c.bf16 %v1353, %v1351
    %v1372 = vpack.c.bf16 %v1354, %v1352
    %v1373 = vpack.c.bf16 %v1357, %v1355
    %v1374 = vpack.c.bf16 %v1358, %v1356
    %v1375 = vld [vmem:[%s5] sm:$0xf]
    %v1376 = vld [vmem:[%s5 + $0x4] sm:$0xf]
    %v1377 = vld [vmem:[%s5 + $0x8] sm:$0xf]
    %v1378 = vld [vmem:[%s5 + $0xc] sm:$0xf]
    %v1379 = vld [vmem:[%s5 + $0x10] sm:$0xf]
    %v1380 = vld [vmem:[%s5 + $0x14] sm:$0xf]
    %v1381 = vld [vmem:[%s5 + $0x18] sm:$0xf]
    %v1382 = vld [vmem:[%s5 + $0x1c] sm:$0xf]
    %v1383 = vld [vmem:[%s5 + $0x20] sm:$0xf]
    %v1384 = vld [vmem:[%s5 + $0x24] sm:$0xf]
    %v1385 = vld [vmem:[%s5 + $0x28] sm:$0xf]
    %v1386 = vld [vmem:[%s5 + $0x2c] sm:$0xf]
    %v1387 = vld [vmem:[%s5 + $0x30] sm:$0xf]
    %v1388 = vld [vmem:[%s5 + $0x34] sm:$0xf]
    %v1389 = vld [vmem:[%s5 + $0x38] sm:$0xf]
    %v1390 = vld [vmem:[%s5 + $0x3c] sm:$0xf]
    %v1391 = vld [vmem:[%s5 + $0x40] sm:$0xf]
    %v1392 = vld [vmem:[%s5 + $0x44] sm:$0xf]
    %v1393 = vld [vmem:[%s5 + $0x48] sm:$0xf]
    %v1394 = vld [vmem:[%s5 + $0x4c] sm:$0xf]
    %v1395 = vld [vmem:[%s5 + $0x50] sm:$0xf]
    %v1396 = vld [vmem:[%s5 + $0x54] sm:$0xf]
    %v1397 = vld [vmem:[%s5 + $0x58] sm:$0xf]
    %v1398 = vld [vmem:[%s5 + $0x5c] sm:$0xf]
    %v1399 = vld [vmem:[%s5 + $0x60] sm:$0xf]
    %v1400 = vld [vmem:[%s5 + $0x64] sm:$0xf]
    %v1401 = vld [vmem:[%s5 + $0x68] sm:$0xf]
    %v1402 = vld [vmem:[%s5 + $0x6c] sm:$0xf]
    %v1403 = vld [vmem:[%s5 + $0x70] sm:$0xf]
    %v1404 = vld [vmem:[%s5 + $0x74] sm:$0xf]
    %v1405 = vld [vmem:[%s5 + $0x78] sm:$0xf]
    %v1406 = vld [vmem:[%s5 + $0x7c] sm:$0xf]
    %v1407 = vld [vmem:[%s5 + $0x80] sm:$0xf]
    %v1408 = vld [vmem:[%s5 + $0x84] sm:$0xf]
    %v1409 = vld [vmem:[%s5 + $0x88] sm:$0xf]
    %v1410 = vld [vmem:[%s5 + $0x8c] sm:$0xf]
    %v1411 = vld [vmem:[%s5 + $0x90] sm:$0xf]
    %v1412 = vld [vmem:[%s5 + $0x94] sm:$0xf]
    %v1413 = vld [vmem:[%s5 + $0x98] sm:$0xf]
    %v1414 = vld [vmem:[%s5 + $0x9c] sm:$0xf]
    %v1415 = vld [vmem:[%s5 + $0xa0] sm:$0xf]
    %v1416 = vld [vmem:[%s5 + $0xa4] sm:$0xf]
    %v1417 = vld [vmem:[%s5 + $0xa8] sm:$0xf]
    %v1418 = vld [vmem:[%s5 + $0xac] sm:$0xf]
    %v1419 = vld [vmem:[%s5 + $0xb0] sm:$0xf]
    %v1420 = vld [vmem:[%s5 + $0xb4] sm:$0xf]
    %v1421 = vld [vmem:[%s5 + $0xb8] sm:$0xf]
    %v1422 = vld [vmem:[%s5 + $0xbc] sm:$0xf]
    %v1423 = vld [vmem:[%s5 + $0xc0] sm:$0xf]
    %v1424 = vld [vmem:[%s5 + $0xc4] sm:$0xf]
    %v1425 = vld [vmem:[%s5 + $0xc8] sm:$0xf]
    %v1426 = vld [vmem:[%s5 + $0xcc] sm:$0xf]
    %v1427 = vld [vmem:[%s5 + $0xd0] sm:$0xf]
    %v1428 = vld [vmem:[%s5 + $0xd4] sm:$0xf]
    %v1429 = vld [vmem:[%s5 + $0xd8] sm:$0xf]
    %v1430 = vld [vmem:[%s5 + $0xdc] sm:$0xf]
    %v1431 = vld [vmem:[%s5 + $0xe0] sm:$0xf]
    %v1432 = vld [vmem:[%s5 + $0xe4] sm:$0xf]
    %v1433 = vld [vmem:[%s5 + $0xe8] sm:$0xf]
    %v1434 = vld [vmem:[%s5 + $0xec] sm:$0xf]
    %v1435 = vld [vmem:[%s5 + $0xf0] sm:$0xf]
    %v1436 = vld [vmem:[%s5 + $0xf4] sm:$0xf]
    %v1437 = vld [vmem:[%s5 + $0xf8] sm:$0xf]
    %v1438 = vld [vmem:[%s5 + $0xfc] sm:$0xf]
    %v1439 = vld [vmem:[%s5 + $0x100] sm:$0xf]
    %v1440 = vld [vmem:[%s5 + $0x104] sm:$0xf]
    %v1441 = vld [vmem:[%s5 + $0x108] sm:$0xf]
    %v1442 = vld [vmem:[%s5 + $0x10c] sm:$0xf]
    %v1443 = vld [vmem:[%s5 + $0x110] sm:$0xf]
    %v1444 = vld [vmem:[%s5 + $0x114] sm:$0xf]
    %v1445 = vld [vmem:[%s5 + $0x118] sm:$0xf]
    %v1446 = vld [vmem:[%s5 + $0x11c] sm:$0xf]
    %v1447 = vld [vmem:[%s5 + $0x120] sm:$0xf]
    %v1448 = vld [vmem:[%s5 + $0x124] sm:$0xf]
    %v1449 = vld [vmem:[%s5 + $0x128] sm:$0xf]
    %v1450 = vld [vmem:[%s5 + $0x12c] sm:$0xf]
    %v1451 = vld [vmem:[%s5 + $0x130] sm:$0xf]
    %v1452 = vld [vmem:[%s5 + $0x134] sm:$0xf]
    %v1453 = vld [vmem:[%s5 + $0x138] sm:$0xf]
    %v1454 = vld [vmem:[%s5 + $0x13c] sm:$0xf]
    %v1455 = vld [vmem:[%s5 + $0x140] sm:$0xf]
    %v1456 = vld [vmem:[%s5 + $0x144] sm:$0xf]
    %v1457 = vld [vmem:[%s5 + $0x148] sm:$0xf]
    %v1458 = vld [vmem:[%s5 + $0x14c] sm:$0xf]
    %v1459 = vld [vmem:[%s5 + $0x150] sm:$0xf]
    %v1460 = vld [vmem:[%s5 + $0x154] sm:$0xf]
    %v1461 = vld [vmem:[%s5 + $0x158] sm:$0xf]
    %v1462 = vld [vmem:[%s5 + $0x15c] sm:$0xf]
    %v1463 = vld [vmem:[%s5 + $0x160] sm:$0xf]
    %v1464 = vld [vmem:[%s5 + $0x164] sm:$0xf]
    %v1465 = vld [vmem:[%s5 + $0x168] sm:$0xf]
    %v1466 = vld [vmem:[%s5 + $0x16c] sm:$0xf]
    %v1467 = vld [vmem:[%s5 + $0x170] sm:$0xf]
    %v1468 = vld [vmem:[%s5 + $0x174] sm:$0xf]
    %v1469 = vld [vmem:[%s5 + $0x178] sm:$0xf]
    %v1470 = vld [vmem:[%s5 + $0x17c] sm:$0xf]
    %v1471 = vld [vmem:[%s6] sm:$0x1]
    %v1473 = vshrl.u32 %v1359, 16
    %v1475 = vrot.slane %v1473, 7
    %v1477 = vshrl.u32 %v1360, 16
    %v1479 = vrot.slane %v1477, 7
    %v1481 = vshrl.u32 %v1361, 16
    %v1483 = vrot.slane %v1481, 7
    %v1485 = vshrl.u32 %v1362, 16
    %v1487 = vrot.slane %v1485, 7
    %v1489 = vshrl.u32 %v1363, 16
    %v1491 = vrot.slane %v1489, 7
    %v1493 = vshrl.u32 %v1364, 16
    %v1495 = vrot.slane %v1493, 7
    %v1497 = vshrl.u32 %v1365, 16
    %v1499 = vrot.slane %v1497, 7
    %v1501 = vshrl.u32 %v1366, 16
    %v1503 = vrot.slane %v1501, 7
    %v1505 = vshrl.u32 %v1367, 16
    %v1507 = vrot.slane %v1505, 7
    %v1509 = vshrl.u32 %v1368, 16
    %v1511 = vrot.slane %v1509, 7
    %v1513 = vshrl.u32 %v1369, 16
    %v1515 = vrot.slane %v1513, 7
    %v1517 = vshrl.u32 %v1370, 16
    %v1519 = vrot.slane %v1517, 7
    %v1521 = vshrl.u32 %v1371, 16
    %v1523 = vrot.slane %v1521, 7
    %v1525 = vshrl.u32 %v1372, 16
    %v1527 = vrot.slane %v1525, 7
    %v1529 = vshrl.u32 %v1373, 16
    %v1531 = vrot.slane %v1529, 7
    %v1533 = vshrl.u32 %v1374, 16
    %v1535 = vrot.slane %v1533, 7
    %v1552 = vshll.u32 %v1359, 16
    %v1554 = vor.u32 %v1475, %v1552
    %v1555 = vshll.u32 %v1360, 16
    %v1557 = vor.u32 %v1479, %v1555
    %v1558 = vshll.u32 %v1361, 16
    %v1560 = vor.u32 %v1483, %v1558
    %v1561 = vshll.u32 %v1362, 16
    %v1563 = vor.u32 %v1487, %v1561
    %v1564 = vshll.u32 %v1363, 16
    %v1566 = vor.u32 %v1491, %v1564
    %v1567 = vshll.u32 %v1364, 16
    %v1569 = vor.u32 %v1495, %v1567
    %v1570 = vshll.u32 %v1365, 16
    %v1572 = vor.u32 %v1499, %v1570
    %v1573 = vshll.u32 %v1366, 16
    %v1575 = vor.u32 %v1503, %v1573
    %v1576 = vshll.u32 %v1367, 16
    %v1578 = vor.u32 %v1507, %v1576
    %v1579 = vshll.u32 %v1368, 16
    %v1581 = vor.u32 %v1511, %v1579
    %v1582 = vshll.u32 %v1369, 16
    %v1584 = vor.u32 %v1515, %v1582
    %v1585 = vshll.u32 %v1370, 16
    %v1587 = vor.u32 %v1519, %v1585
    %v1588 = vshll.u32 %v1371, 16
    %v1590 = vor.u32 %v1523, %v1588
    %v1591 = vshll.u32 %v1372, 16
    %v1593 = vor.u32 %v1527, %v1591
    %v1594 = vshll.u32 %v1373, 16
    %v1596 = vor.u32 %v1531, %v1594
    %v1597 = vshll.u32 %v1374, 16
    %v1599 = vor.u32 %v1535, %v1597
    %v1616 = vsel %vm492, %v1475, %v1554
    %v1617 = vsel %vm492, %v1479, %v1557
    %v1618 = vsel %vm492, %v1483, %v1560
    %v1619 = vsel %vm492, %v1487, %v1563
    %v1620 = vsel %vm492, %v1491, %v1566
    %v1621 = vsel %vm492, %v1495, %v1569
    %v1622 = vsel %vm492, %v1499, %v1572
    %v1623 = vsel %vm492, %v1503, %v1575
    %v1624 = vsel %vm492, %v1507, %v1578
    %v1625 = vsel %vm492, %v1511, %v1581
    %v1626 = vsel %vm492, %v1515, %v1584
    %v1627 = vsel %vm492, %v1519, %v1587
    %v1628 = vsel %vm492, %v1523, %v1590
    %v1629 = vsel %vm492, %v1527, %v1593
    %v1630 = vsel %vm492, %v1531, %v1596
    %v1631 = vsel %vm492, %v1535, %v1599
    %v1632 = vrot.slane %v1552, 1
    %v1633 = vor.u32 %v1473, %v1632
    %v1634 = vrot.slane %v1555, 1
    %v1635 = vor.u32 %v1477, %v1634
    %v1636 = vrot.slane %v1558, 1
    %v1637 = vor.u32 %v1481, %v1636
    %v1638 = vrot.slane %v1561, 1
    %v1639 = vor.u32 %v1485, %v1638
    %v1640 = vrot.slane %v1564, 1
    %v1641 = vor.u32 %v1489, %v1640
    %v1642 = vrot.slane %v1567, 1
    %v1643 = vor.u32 %v1493, %v1642
    %v1644 = vrot.slane %v1570, 1
    %v1645 = vor.u32 %v1497, %v1644
    %v1646 = vrot.slane %v1573, 1
    %v1647 = vor.u32 %v1501, %v1646
    %v1648 = vrot.slane %v1576, 1
    %v1649 = vor.u32 %v1505, %v1648
    %v1650 = vrot.slane %v1579, 1
    %v1651 = vor.u32 %v1509, %v1650
    %v1652 = vrot.slane %v1582, 1
    %v1653 = vor.u32 %v1513, %v1652
    %v1654 = vrot.slane %v1585, 1
    %v1655 = vor.u32 %v1517, %v1654
    %v1656 = vrot.slane %v1588, 1
    %v1657 = vor.u32 %v1521, %v1656
    %v1658 = vrot.slane %v1591, 1
    %v1659 = vor.u32 %v1525, %v1658
    %v1660 = vrot.slane %v1594, 1
    %v1661 = vor.u32 %v1529, %v1660
    %v1662 = vrot.slane %v1597, 1
    %v1663 = vor.u32 %v1533, %v1662
    %v1696 = vsel %vm535, %v1633, %v1632
    %v1697 = vsel %vm535, %v1635, %v1634
    %v1698 = vsel %vm535, %v1637, %v1636
    %v1699 = vsel %vm535, %v1639, %v1638
    %v1700 = vsel %vm535, %v1641, %v1640
    %v1701 = vsel %vm535, %v1643, %v1642
    %v1702 = vsel %vm535, %v1645, %v1644
    %v1703 = vsel %vm535, %v1647, %v1646
    %v1704 = vsel %vm535, %v1649, %v1648
    %v1705 = vsel %vm535, %v1651, %v1650
    %v1706 = vsel %vm535, %v1653, %v1652
    %v1707 = vsel %vm535, %v1655, %v1654
    %v1708 = vsel %vm535, %v1657, %v1656
    %v1709 = vsel %vm535, %v1659, %v1658
    %v1710 = vsel %vm535, %v1661, %v1660
    %v1711 = vsel %vm535, %v1663, %v1662
    %v1713 = vlaneseq
    %v1714 = vshrl.u32 %v1713, 7
    %v1715 = vsub.s32 0, %v1714
    %v1716 = vrot.slane %v1471, %v1715
    %v1814 = vunpack.c.l.b16 %v1375
    %v1815 = vunpack.c.l.b16 %v1376
    %v1816 = vunpack.c.l.b16 %v1377
    %v1817 = vunpack.c.l.b16 %v1378
    %v1818 = vunpack.c.l.b16 %v1379
    %v1819 = vunpack.c.l.b16 %v1380
    %v1820 = vunpack.c.l.b16 %v1381
    %v1821 = vunpack.c.l.b16 %v1382
    %v1822 = vunpack.c.l.b16 %v1383
    %v1823 = vunpack.c.l.b16 %v1384
    %v1824 = vunpack.c.l.b16 %v1385
    %v1825 = vunpack.c.l.b16 %v1386
    %v1826 = vunpack.c.l.b16 %v1387
    %v1827 = vunpack.c.l.b16 %v1388
    %v1828 = vunpack.c.l.b16 %v1389
    %v1829 = vunpack.c.l.b16 %v1390
    %v1830 = vunpack.c.l.b16 %v1391
    %v1831 = vunpack.c.l.b16 %v1392
    %v1832 = vunpack.c.l.b16 %v1393
    %v1833 = vunpack.c.l.b16 %v1394
    %v1834 = vunpack.c.l.b16 %v1395
    %v1835 = vunpack.c.l.b16 %v1396
    %v1836 = vunpack.c.l.b16 %v1397
    %v1837 = vunpack.c.l.b16 %v1398
    %v1838 = vunpack.c.l.b16 %v1399
    %v1839 = vunpack.c.l.b16 %v1400
    %v1840 = vunpack.c.l.b16 %v1401
    %v1841 = vunpack.c.l.b16 %v1402
    %v1842 = vunpack.c.l.b16 %v1403
    %v1843 = vunpack.c.l.b16 %v1404
    %v1844 = vunpack.c.l.b16 %v1405
    %v1845 = vunpack.c.l.b16 %v1406
    %v1846 = vunpack.c.l.b16 %v1407
    %v1847 = vunpack.c.l.b16 %v1408
    %v1848 = vunpack.c.l.b16 %v1409
    %v1849 = vunpack.c.l.b16 %v1410
    %v1850 = vunpack.c.l.b16 %v1411
    %v1851 = vunpack.c.l.b16 %v1412
    %v1852 = vunpack.c.l.b16 %v1413
    %v1853 = vunpack.c.l.b16 %v1414
    %v1854 = vunpack.c.l.b16 %v1415
    %v1855 = vunpack.c.l.b16 %v1416
    %v1856 = vunpack.c.l.b16 %v1417
    %v1857 = vunpack.c.l.b16 %v1418
    %v1858 = vunpack.c.l.b16 %v1419
    %v1859 = vunpack.c.l.b16 %v1420
    %v1860 = vunpack.c.l.b16 %v1421
    %v1861 = vunpack.c.l.b16 %v1422
    %v1862 = vunpack.c.l.b16 %v1423
    %v1863 = vunpack.c.l.b16 %v1424
    %v1864 = vunpack.c.l.b16 %v1425
    %v1865 = vunpack.c.l.b16 %v1426
    %v1866 = vunpack.c.l.b16 %v1427
    %v1867 = vunpack.c.l.b16 %v1428
    %v1868 = vunpack.c.l.b16 %v1429
    %v1869 = vunpack.c.l.b16 %v1430
    %v1870 = vunpack.c.l.b16 %v1431
    %v1871 = vunpack.c.l.b16 %v1432
    %v1872 = vunpack.c.l.b16 %v1433
    %v1873 = vunpack.c.l.b16 %v1434
    %v1874 = vunpack.c.l.b16 %v1435
    %v1875 = vunpack.c.l.b16 %v1436
    %v1876 = vunpack.c.l.b16 %v1437
    %v1877 = vunpack.c.l.b16 %v1438
    %v1878 = vunpack.c.l.b16 %v1439
    %v1879 = vunpack.c.l.b16 %v1440
    %v1880 = vunpack.c.l.b16 %v1441
    %v1881 = vunpack.c.l.b16 %v1442
    %v1882 = vunpack.c.l.b16 %v1443
    %v1883 = vunpack.c.l.b16 %v1444
    %v1884 = vunpack.c.l.b16 %v1445
    %v1885 = vunpack.c.l.b16 %v1446
    %v1886 = vunpack.c.l.b16 %v1447
    %v1887 = vunpack.c.l.b16 %v1448
    %v1888 = vunpack.c.l.b16 %v1449
    %v1889 = vunpack.c.l.b16 %v1450
    %v1890 = vunpack.c.l.b16 %v1451
    %v1891 = vunpack.c.l.b16 %v1452
    %v1892 = vunpack.c.l.b16 %v1453
    %v1893 = vunpack.c.l.b16 %v1454
    %v1894 = vunpack.c.l.b16 %v1455
    %v1895 = vunpack.c.l.b16 %v1456
    %v1896 = vunpack.c.l.b16 %v1457
    %v1897 = vunpack.c.l.b16 %v1458
    %v1898 = vunpack.c.l.b16 %v1459
    %v1899 = vunpack.c.l.b16 %v1460
    %v1900 = vunpack.c.l.b16 %v1461
    %v1901 = vunpack.c.l.b16 %v1462
    %v1902 = vunpack.c.l.b16 %v1463
    %v1903 = vunpack.c.l.b16 %v1464
    %v1904 = vunpack.c.l.b16 %v1465
    %v1905 = vunpack.c.l.b16 %v1466
    %v1906 = vunpack.c.l.b16 %v1467
    %v1907 = vunpack.c.l.b16 %v1468
    %v1908 = vunpack.c.l.b16 %v1469
    %v1909 = vunpack.c.l.b16 %v1470
    %v1910 = vpack.c.b16 %v1815, %v1814
    %v1911 = vpack.c.b16 %v1817, %v1816
    %v1912 = vpack.c.b16 %v1819, %v1818
    %v1913 = vpack.c.b16 %v1821, %v1820
    %v1914 = vpack.c.b16 %v1823, %v1822
    %v1915 = vpack.c.b16 %v1825, %v1824
    %v1916 = vpack.c.b16 %v1827, %v1826
    %v1917 = vpack.c.b16 %v1829, %v1828
    %v1918 = vpack.c.b16 %v1831, %v1830
    %v1919 = vpack.c.b16 %v1833, %v1832
    %v1920 = vpack.c.b16 %v1835, %v1834
    %v1921 = vpack.c.b16 %v1837, %v1836
    %v1922 = vpack.c.b16 %v1839, %v1838
    %v1923 = vpack.c.b16 %v1841, %v1840
    %v1924 = vpack.c.b16 %v1843, %v1842
    %v1925 = vpack.c.b16 %v1845, %v1844
    %v1926 = vpack.c.b16 %v1847, %v1846
    %v1927 = vpack.c.b16 %v1849, %v1848
    %v1928 = vpack.c.b16 %v1851, %v1850
    %v1929 = vpack.c.b16 %v1853, %v1852
    %v1930 = vpack.c.b16 %v1855, %v1854
    %v1931 = vpack.c.b16 %v1857, %v1856
    %v1932 = vpack.c.b16 %v1859, %v1858
    %v1933 = vpack.c.b16 %v1861, %v1860
    %v1934 = vpack.c.b16 %v1863, %v1862
    %v1935 = vpack.c.b16 %v1865, %v1864
    %v1936 = vpack.c.b16 %v1867, %v1866
    %v1937 = vpack.c.b16 %v1869, %v1868
    %v1938 = vpack.c.b16 %v1871, %v1870
    %v1939 = vpack.c.b16 %v1873, %v1872
    %v1940 = vpack.c.b16 %v1875, %v1874
    %v1941 = vpack.c.b16 %v1877, %v1876
    %v1942 = vpack.c.b16 %v1879, %v1878
    %v1943 = vpack.c.b16 %v1881, %v1880
    %v1944 = vpack.c.b16 %v1883, %v1882
    %v1945 = vpack.c.b16 %v1885, %v1884
    %v1946 = vpack.c.b16 %v1887, %v1886
    %v1947 = vpack.c.b16 %v1889, %v1888
    %v1948 = vpack.c.b16 %v1891, %v1890
    %v1949 = vpack.c.b16 %v1893, %v1892
    %v1950 = vpack.c.b16 %v1895, %v1894
    %v1951 = vpack.c.b16 %v1897, %v1896
    %v1952 = vpack.c.b16 %v1899, %v1898
    %v1953 = vpack.c.b16 %v1901, %v1900
    %v1954 = vpack.c.b16 %v1903, %v1902
    %v1955 = vpack.c.b16 %v1905, %v1904
    %v1956 = vpack.c.b16 %v1907, %v1906
    %v1957 = vpack.c.b16 %v1909, %v1908
    %2006 = vmatprep.subr.bf16.mxu0 0
    %2007 = vmatpush1.bf16.msra.mxu0 %v1910
    %2008 = vmatprep.subr.bf16.mxu0 0
    %2009 = vmatpush1.bf16.msra.mxu0 %v1911
    %2010 = vmatprep.subr.bf16.mxu0 0
    %2011 = vmatpush1.bf16.msra.mxu0 %v1912
    %2012 = vmatprep.subr.bf16.mxu0 0
    %2013 = vmatpush1.bf16.msra.mxu0 %v1913
    %2014 = vmatprep.subr.bf16.mxu0 0
    %2015 = vmatpush1.bf16.msra.mxu0 %v1914
    %2016 = vmatprep.subr.bf16.mxu0 0
    %2017 = vmatpush1.bf16.msra.mxu0 %v1915
    %2018 = vmatprep.subr.bf16.mxu0 0
    %2019 = vmatpush1.bf16.msra.mxu0 %v1916
    %2020 = vmatprep.subr.bf16.mxu0 0
    %2021 = vmatpush1.bf16.msra.mxu0 %v1917
    %2022 = vmatprep.subr.bf16.mxu0 0
    %2023 = vmatpush1.bf16.msra.mxu0 %v1918
    %2024 = vmatprep.subr.bf16.mxu0 0
    %2025 = vmatpush1.bf16.msra.mxu0 %v1919
    %2026 = vmatprep.subr.bf16.mxu0 0
    %2027 = vmatpush1.bf16.msra.mxu0 %v1920
    %2028 = vmatprep.subr.bf16.mxu0 0
    %2029 = vmatpush1.bf16.msra.mxu0 %v1921
    %2030 = vmatprep.subr.bf16.mxu0 0
    %2031 = vmatpush1.bf16.msra.mxu0 %v1922
    %2032 = vmatprep.subr.bf16.mxu0 0
    %2033 = vmatpush1.bf16.msra.mxu0 %v1923
    %2034 = vmatprep.subr.bf16.mxu0 0
    %2035 = vmatpush1.bf16.msra.mxu0 %v1924
    %2036 = vmatprep.subr.bf16.mxu0 0
    %2037 = vmatpush1.bf16.msra.mxu0 %v1925
    %2038 = vmatprep.mubr.bf16.mxu0 %v1617
    %2039 = vmatmul.mubr.bf16.gmra.mrb[0].mxu0 %v1616
    %v2040 = vpop.f32.mrb[0].mxu0
    %v2041 = vadd.f32 %v1716, %v2040
    %v2042 = vpop.f32.mrb[0].mxu0
    %v2043 = vpop.f32.mrb[0].mxu0
    %v2044 = vadd.f32 %v1716, %v2043
    %v2045 = vpop.f32.mrb[0].mxu0
    %2046 = vmatprep.mubr.bf16.mxu0 %v1619
    %2047 = vmatmul.mubr.bf16.gmra.mrb[0].mxu0 %v1618
    %v2048 = vpop.f32.mrb[0].mxu0
    %v2049 = vadd.f32 %v1716, %v2048
    %v2050 = vpop.f32.mrb[0].mxu0
    %v2051 = vpop.f32.mrb[0].mxu0
    %v2052 = vadd.f32 %v1716, %v2051
    %v2053 = vpop.f32.mrb[0].mxu0
    %2054 = vmatprep.mubr.bf16.mxu0 %v1621
    %2055 = vmatmul.mubr.bf16.gmra.mrb[0].mxu0 %v1620
    %v2056 = vpop.f32.mrb[0].mxu0
    %v2057 = vadd.f32 %v1716, %v2056
    %v2058 = vpop.f32.mrb[0].mxu0
    %v2059 = vpop.f32.mrb[0].mxu0
    %v2060 = vadd.f32 %v1716, %v2059
    %v2061 = vpop.f32.mrb[0].mxu0
    %2062 = vmatprep.mubr.bf16.mxu0 %v1623
    %2063 = vmatmul.mubr.bf16.gmra.mrb[0].mxu0 %v1622
    %v2064 = vpop.f32.mrb[0].mxu0
    %v2065 = vadd.f32 %v1716, %v2064
    %v2066 = vpop.f32.mrb[0].mxu0
    %v2067 = vpop.f32.mrb[0].mxu0
    %v2068 = vadd.f32 %v1716, %v2067
    %v2069 = vpop.f32.mrb[0].mxu0
    %2070 = vmatprep.mubr.bf16.mxu0 %v1625
    %2071 = vmatmul.mubr.bf16.gmra.mrb[0].mxu0 %v1624
    %v2072 = vpop.f32.mrb[0].mxu0
    %v2073 = vadd.f32 %v1716, %v2072
    %v2074 = vpop.f32.mrb[0].mxu0
    %v2075 = vpop.f32.mrb[0].mxu0
    %v2076 = vadd.f32 %v1716, %v2075
    %v2077 = vpop.f32.mrb[0].mxu0
    %2078 = vmatprep.mubr.bf16.mxu0 %v1627
    %2079 = vmatmul.mubr.bf16.gmra.mrb[0].mxu0 %v1626
    %v2080 = vpop.f32.mrb[0].mxu0
    %v2081 = vadd.f32 %v1716, %v2080
    %v2082 = vpop.f32.mrb[0].mxu0
    %v2083 = vpop.f32.mrb[0].mxu0
    %v2084 = vadd.f32 %v1716, %v2083
    %v2085 = vpop.f32.mrb[0].mxu0
    %2086 = vmatprep.mubr.bf16.mxu0 %v1629
    %2087 = vmatmul.mubr.bf16.gmra.mrb[0].mxu0 %v1628
    %v2088 = vpop.f32.mrb[0].mxu0
    %v2089 = vadd.f32 %v1716, %v2088
    %v2090 = vpop.f32.mrb[0].mxu0
    %v2091 = vpop.f32.mrb[0].mxu0
    %v2092 = vadd.f32 %v1716, %v2091
    %v2093 = vpop.f32.mrb[0].mxu0
    %2094 = vmatprep.mubr.bf16.mxu0 %v1631
    %2095 = vmatmul.mubr.bf16.gmra.mrb[0].mxu0 %v1630
    %v2096 = vpop.f32.mrb[0].mxu0
    %v2097 = vadd.f32 %v1716, %v2096
    %v2098 = vpop.f32.mrb[0].mxu0
    %v2099 = vpop.f32.mrb[0].mxu0
    %v2100 = vadd.f32 %v1716, %v2099
    %v2101 = vpop.f32.mrb[0].mxu0
    %2102 = vdwg.mxu0
    %2103 = vmatprep.subr.bf16.mxu0 0
    %2104 = vmatpush1.bf16.msra.mxu0 %v1926
    %2105 = vmatprep.subr.bf16.mxu0 0
    %2106 = vmatpush1.bf16.msra.mxu0 %v1927
    %2107 = vmatprep.subr.bf16.mxu0 0
    %2108 = vmatpush1.bf16.msra.mxu0 %v1928
    %2109 = vmatprep.subr.bf16.mxu0 0
    %2110 = vmatpush1.bf16.msra.mxu0 %v1929
    %2111 = vmatprep.subr.bf16.mxu0 0
    %2112 = vmatpush1.bf16.msra.mxu0 %v1930
    %2113 = vmatprep.subr.bf16.mxu0 0
    %2114 = vmatpush1.bf16.msra.mxu0 %v1931
    %2115 = vmatprep.subr.bf16.mxu0 0
    %2116 = vmatpush1.bf16.msra.mxu0 %v1932
    %2117 = vmatprep.subr.bf16.mxu0 0
    %2118 = vmatpush1.bf16.msra.mxu0 %v1933
    %2119 = vmatprep.subr.bf16.mxu0 0
    %2120 = vmatpush1.bf16.msra.mxu0 %v1934
    %2121 = vmatprep.subr.bf16.mxu0 0
    %2122 = vmatpush1.bf16.msra.mxu0 %v1935
    %2123 = vmatprep.subr.bf16.mxu0 0
    %2124 = vmatpush1.bf16.msra.mxu0 %v1936
    %2125 = vmatprep.subr.bf16.mxu0 0
    %2126 = vmatpush1.bf16.msra.mxu0 %v1937
    %2127 = vmatprep.subr.bf16.mxu0 0
    %2128 = vmatpush1.bf16.msra.mxu0 %v1938
    %2129 = vmatprep.subr.bf16.mxu0 0
    %2130 = vmatpush1.bf16.msra.mxu0 %v1939
    %2131 = vmatprep.subr.bf16.mxu0 0
    %2132 = vmatpush1.bf16.msra.mxu0 %v1940
    %2133 = vmatprep.subr.bf16.mxu0 0
    %2134 = vmatpush1.bf16.msra.mxu0 %v1941
    %2135 = vmatprep.mubr.bf16.mxu0 %v1360
    %2136 = vmatmul.mubr.bf16.gmra.mrb[0].mxu0 %v1359
    %v2137 = vpop.f32.mrb[0].mxu0
    %v2138 = vadd.f32 %v2041, %v2137
    %v2139 = vpop.f32.mrb[0].mxu0
    %v2140 = vpop.f32.mrb[0].mxu0
    %v2141 = vadd.f32 %v2044, %v2140
    %v2142 = vpop.f32.mrb[0].mxu0
    %2143 = vmatprep.mubr.bf16.mxu0 %v1362
    %2144 = vmatmul.mubr.bf16.gmra.mrb[0].mxu0 %v1361
    %v2145 = vpop.f32.mrb[0].mxu0
    %v2146 = vadd.f32 %v2049, %v2145
    %v2147 = vpop.f32.mrb[0].mxu0
    %v2148 = vpop.f32.mrb[0].mxu0
    %v2149 = vadd.f32 %v2052, %v2148
    %v2150 = vpop.f32.mrb[0].mxu0
    %2151 = vmatprep.mubr.bf16.mxu0 %v1364
    %2152 = vmatmul.mubr.bf16.gmra.mrb[0].mxu0 %v1363
    %v2153 = vpop.f32.mrb[0].mxu0
    %v2154 = vadd.f32 %v2057, %v2153
    %v2155 = vpop.f32.mrb[0].mxu0
    %v2156 = vpop.f32.mrb[0].mxu0
    %v2157 = vadd.f32 %v2060, %v2156
    %v2158 = vpop.f32.mrb[0].mxu0
    %2159 = vmatprep.mubr.bf16.mxu0 %v1366
    %2160 = vmatmul.mubr.bf16.gmra.mrb[0].mxu0 %v1365
    %v2161 = vpop.f32.mrb[0].mxu0
    %v2162 = vadd.f32 %v2065, %v2161
    %v2163 = vpop.f32.mrb[0].mxu0
    %v2164 = vpop.f32.mrb[0].mxu0
    %v2165 = vadd.f32 %v2068, %v2164
    %v2166 = vpop.f32.mrb[0].mxu0
    %2167 = vmatprep.mubr.bf16.mxu0 %v1368
    %2168 = vmatmul.mubr.bf16.gmra.mrb[0].mxu0 %v1367
    %v2169 = vpop.f32.mrb[0].mxu0
    %v2170 = vadd.f32 %v2073, %v2169
    %v2171 = vpop.f32.mrb[0].mxu0
    %v2172 = vpop.f32.mrb[0].mxu0
    %v2173 = vadd.f32 %v2076, %v2172
    %v2174 = vpop.f32.mrb[0].mxu0
    %2175 = vmatprep.mubr.bf16.mxu0 %v1370
    %2176 = vmatmul.mubr.bf16.gmra.mrb[0].mxu0 %v1369
    %v2177 = vpop.f32.mrb[0].mxu0
    %v2178 = vadd.f32 %v2081, %v2177
    %v2179 = vpop.f32.mrb[0].mxu0
    %v2180 = vpop.f32.mrb[0].mxu0
    %v2181 = vadd.f32 %v2084, %v2180
    %v2182 = vpop.f32.mrb[0].mxu0
    %2183 = vmatprep.mubr.bf16.mxu0 %v1372
    %2184 = vmatmul.mubr.bf16.gmra.mrb[0].mxu0 %v1371
    %v2185 = vpop.f32.mrb[0].mxu0
    %v2186 = vadd.f32 %v2089, %v2185
    %v2187 = vpop.f32.mrb[0].mxu0
    %v2188 = vpop.f32.mrb[0].mxu0
    %v2189 = vadd.f32 %v2092, %v2188
    %v2190 = vpop.f32.mrb[0].mxu0
    %2191 = vmatprep.mubr.bf16.mxu0 %v1374
    %2192 = vmatmul.mubr.bf16.gmra.mrb[0].mxu0 %v1373
    %v2193 = vpop.f32.mrb[0].mxu0
    %v2194 = vadd.f32 %v2097, %v2193
    %v2195 = vpop.f32.mrb[0].mxu0
    %v2196 = vpop.f32.mrb[0].mxu0
    %v2197 = vadd.f32 %v2100, %v2196
    %v2198 = vpop.f32.mrb[0].mxu0
    %2199 = vdwg.mxu0
    %2200 = vmatprep.subr.bf16.mxu0 0
    %2201 = vmatpush1.bf16.msra.mxu0 %v1942
    %2202 = vmatprep.subr.bf16.mxu0 0
    %2203 = vmatpush1.bf16.msra.mxu0 %v1943
    %2204 = vmatprep.subr.bf16.mxu0 0
    %2205 = vmatpush1.bf16.msra.mxu0 %v1944
    %2206 = vmatprep.subr.bf16.mxu0 0
    %2207 = vmatpush1.bf16.msra.mxu0 %v1945
    %2208 = vmatprep.subr.bf16.mxu0 0
    %2209 = vmatpush1.bf16.msra.mxu0 %v1946
    %2210 = vmatprep.subr.bf16.mxu0 0
    %2211 = vmatpush1.bf16.msra.mxu0 %v1947
    %2212 = vmatprep.subr.bf16.mxu0 0
    %2213 = vmatpush1.bf16.msra.mxu0 %v1948
    %2214 = vmatprep.subr.bf16.mxu0 0
    %2215 = vmatpush1.bf16.msra.mxu0 %v1949
    %2216 = vmatprep.subr.bf16.mxu0 0
    %2217 = vmatpush1.bf16.msra.mxu0 %v1950
    %2218 = vmatprep.subr.bf16.mxu0 0
    %2219 = vmatpush1.bf16.msra.mxu0 %v1951
    %2220 = vmatprep.subr.bf16.mxu0 0
    %2221 = vmatpush1.bf16.msra.mxu0 %v1952
    %2222 = vmatprep.subr.bf16.mxu0 0
    %2223 = vmatpush1.bf16.msra.mxu0 %v1953
    %2224 = vmatprep.subr.bf16.mxu0 0
    %2225 = vmatpush1.bf16.msra.mxu0 %v1954
    %2226 = vmatprep.subr.bf16.mxu0 0
    %2227 = vmatpush1.bf16.msra.mxu0 %v1955
    %2228 = vmatprep.subr.bf16.mxu0 0
    %2229 = vmatpush1.bf16.msra.mxu0 %v1956
    %2230 = vmatprep.subr.bf16.mxu0 0
    %2231 = vmatpush1.bf16.msra.mxu0 %v1957
    %2232 = vmatprep.mubr.bf16.mxu0 %v1697
    %2233 = vmatmul.mubr.bf16.gmra.mrb[0].mxu0 %v1696
    %v2234 = vpop.f32.mrb[0].mxu0
    %v2235 = vadd.f32 %v2138, %v2234
    %v2236 = vpop.f32.mrb[0].mxu0
    %v2237 = vpop.f32.mrb[0].mxu0
    %v2238 = vadd.f32 %v2141, %v2237
    %v2239 = vpop.f32.mrb[0].mxu0
    %2240 = vmatprep.mubr.bf16.mxu0 %v1699
    %2241 = vmatmul.mubr.bf16.gmra.mrb[0].mxu0 %v1698
    %v2242 = vpop.f32.mrb[0].mxu0
    %v2243 = vadd.f32 %v2146, %v2242
    %v2244 = vpop.f32.mrb[0].mxu0
    %v2245 = vpop.f32.mrb[0].mxu0
    %v2246 = vadd.f32 %v2149, %v2245
    %v2247 = vpop.f32.mrb[0].mxu0
    %2248 = vmatprep.mubr.bf16.mxu0 %v1701
    %2249 = vmatmul.mubr.bf16.gmra.mrb[0].mxu0 %v1700
    %v2250 = vpop.f32.mrb[0].mxu0
    %v2251 = vadd.f32 %v2154, %v2250
    %v2252 = vpop.f32.mrb[0].mxu0
    %v2253 = vpop.f32.mrb[0].mxu0
    %v2254 = vadd.f32 %v2157, %v2253
    %v2255 = vpop.f32.mrb[0].mxu0
    %2256 = vmatprep.mubr.bf16.mxu0 %v1703
    %2257 = vmatmul.mubr.bf16.gmra.mrb[0].mxu0 %v1702
    %v2258 = vpop.f32.mrb[0].mxu0
    %v2259 = vadd.f32 %v2162, %v2258
    %v2260 = vpop.f32.mrb[0].mxu0
    %v2261 = vpop.f32.mrb[0].mxu0
    %v2262 = vadd.f32 %v2165, %v2261
    %v2263 = vpop.f32.mrb[0].mxu0
    %2264 = vmatprep.mubr.bf16.mxu0 %v1705
    %2265 = vmatmul.mubr.bf16.gmra.mrb[0].mxu0 %v1704
    %v2266 = vpop.f32.mrb[0].mxu0
    %v2267 = vadd.f32 %v2170, %v2266
    %v2268 = vpop.f32.mrb[0].mxu0
    %v2269 = vpop.f32.mrb[0].mxu0
    %v2270 = vadd.f32 %v2173, %v2269
    %v2271 = vpop.f32.mrb[0].mxu0
    %2272 = vmatprep.mubr.bf16.mxu0 %v1707
    %2273 = vmatmul.mubr.bf16.gmra.mrb[0].mxu0 %v1706
    %v2274 = vpop.f32.mrb[0].mxu0
    %v2275 = vadd.f32 %v2178, %v2274
    %v2276 = vpop.f32.mrb[0].mxu0
    %v2277 = vpop.f32.mrb[0].mxu0
    %v2278 = vadd.f32 %v2181, %v2277
    %v2279 = vpop.f32.mrb[0].mxu0
    %2280 = vmatprep.mubr.bf16.mxu0 %v1709
    %2281 = vmatmul.mubr.bf16.gmra.mrb[0].mxu0 %v1708
    %v2282 = vpop.f32.mrb[0].mxu0
    %v2283 = vadd.f32 %v2186, %v2282
    %v2284 = vpop.f32.mrb[0].mxu0
    %v2285 = vpop.f32.mrb[0].mxu0
    %v2286 = vadd.f32 %v2189, %v2285
    %v2287 = vpop.f32.mrb[0].mxu0
    %2288 = vmatprep.mubr.bf16.mxu0 %v1711
    %2289 = vmatmul.mubr.bf16.gmra.mrb[0].mxu0 %v1710
    %v2290 = vpop.f32.mrb[0].mxu0
    %v2291 = vadd.f32 %v2194, %v2290
    %v2292 = vpop.f32.mrb[0].mxu0
    %v2293 = vpop.f32.mrb[0].mxu0
    %v2294 = vadd.f32 %v2197, %v2293
    %v2295 = vpop.f32.mrb[0].mxu0
    %2296 = vdwg.mxu0
    %v2297 = vmax.f32 %v2235, 0.0
    %v2298 = vmax.f32 %v2238, 0.0
    %v2299 = vmax.f32 %v2243, 0.0
    %v2300 = vmax.f32 %v2246, 0.0
    %v2301 = vmax.f32 %v2251, 0.0
    %v2302 = vmax.f32 %v2254, 0.0
    %v2303 = vmax.f32 %v2259, 0.0
    %v2304 = vmax.f32 %v2262, 0.0
    %v2305 = vmax.f32 %v2267, 0.0
    %v2306 = vmax.f32 %v2270, 0.0
    %v2307 = vmax.f32 %v2275, 0.0
    %v2308 = vmax.f32 %v2278, 0.0
    %v2309 = vmax.f32 %v2283, 0.0
    %v2310 = vmax.f32 %v2286, 0.0
    %v2311 = vmax.f32 %v2291, 0.0
    %v2312 = vmax.f32 %v2294, 0.0
    %v2313 = vadd.f32 %v2297, %v2298
    %v2314 = vrot.slane %v2313, 4
    %v2315 = vadd.f32 %v2313, %v2314
    %v2316 = vrot.slane %v2315, 2
    %v2317 = vadd.f32 %v2315, %v2316
    %v2318 = vrot.slane %v2317, 1
    %v2319 = vadd.f32 %v2317, %v2318
    %v2320 = vadd.f32 %v2299, %v2300
    %v2321 = vrot.slane %v2320, 4
    %v2322 = vadd.f32 %v2320, %v2321
    %v2323 = vrot.slane %v2322, 2
    %v2324 = vadd.f32 %v2322, %v2323
    %v2325 = vrot.slane %v2324, 1
    %v2326 = vadd.f32 %v2324, %v2325
    %v2327 = vadd.f32 %v2301, %v2302
    %v2328 = vrot.slane %v2327, 4
    %v2329 = vadd.f32 %v2327, %v2328
    %v2330 = vrot.slane %v2329, 2
    %v2331 = vadd.f32 %v2329, %v2330
    %v2332 = vrot.slane %v2331, 1
    %v2333 = vadd.f32 %v2331, %v2332
    %v2334 = vadd.f32 %v2303, %v2304
    %v2335 = vrot.slane %v2334, 4
    %v2336 = vadd.f32 %v2334, %v2335
    %v2337 = vrot.slane %v2336, 2
    %v2338 = vadd.f32 %v2336, %v2337
    %v2339 = vrot.slane %v2338, 1
    %v2340 = vadd.f32 %v2338, %v2339
    %v2341 = vadd.f32 %v2305, %v2306
    %v2342 = vrot.slane %v2341, 4
    %v2343 = vadd.f32 %v2341, %v2342
    %v2344 = vrot.slane %v2343, 2
    %v2345 = vadd.f32 %v2343, %v2344
    %v2346 = vrot.slane %v2345, 1
    %v2347 = vadd.f32 %v2345, %v2346
    %v2348 = vadd.f32 %v2307, %v2308
    %v2349 = vrot.slane %v2348, 4
    %v2350 = vadd.f32 %v2348, %v2349
    %v2351 = vrot.slane %v2350, 2
    %v2352 = vadd.f32 %v2350, %v2351
    %v2353 = vrot.slane %v2352, 1
    %v2354 = vadd.f32 %v2352, %v2353
    %v2355 = vadd.f32 %v2309, %v2310
    %v2356 = vrot.slane %v2355, 4
    %v2357 = vadd.f32 %v2355, %v2356
    %v2358 = vrot.slane %v2357, 2
    %v2359 = vadd.f32 %v2357, %v2358
    %v2360 = vrot.slane %v2359, 1
    %v2361 = vadd.f32 %v2359, %v2360
    %v2362 = vadd.f32 %v2311, %v2312
    %v2363 = vrot.slane %v2362, 4
    %v2364 = vadd.f32 %v2362, %v2363
    %v2365 = vrot.slane %v2364, 2
    %v2366 = vadd.f32 %v2364, %v2365
    %v2367 = vrot.slane %v2366, 1
    %v2368 = vadd.f32 %v2366, %v2367
    %v2369 = vrcp.pop 16.0
    %v2370 = vmul.f32 %v2319, %v2369
    %v2371 = vmul.f32 %v2326, %v2369
    %v2372 = vmul.f32 %v2333, %v2369
    %v2373 = vmul.f32 %v2340, %v2369
    %v2374 = vmul.f32 %v2347, %v2369
    %v2375 = vmul.f32 %v2354, %v2369
    %v2376 = vmul.f32 %v2361, %v2369
    %v2377 = vmul.f32 %v2368, %v2369
    %v2378 = vld [vmem:[%s7] sm:$0x1]
    %v2379 = vld [vmem:[#allocation2] sm:$0x1]
    %2381 = vset.pattern.permute.xlu0 0
    %2382 = vperm.xlu0 %2381, %v2379
    %v2383 = vpop.permute.xlu0 %2382
    %v2385 = vlaneseq
    %v2386 = vshrl.u32 %v2385, 7
    %v2387 = vsub.s32 0, %v2386
    %v2388 = vrot.slane %v2383, %v2387
    %vm2397 = vcmask 1041409
    %v2398 = vsel %vm2397, %v2371, %v2370
    %vm2399 = vcmask 1042434
    %v2400 = vsel %vm2399, %v2372, %v2398
    %vm2401 = vcmask 1043459
    %v2402 = vsel %vm2401, %v2373, %v2400
    %vm2403 = vcmask 1044484
    %v2404 = vsel %vm2403, %v2374, %v2402
    %vm2405 = vcmask 1045509
    %v2406 = vsel %vm2405, %v2375, %v2404
    %vm2407 = vcmask 1046534
    %v2408 = vsel %vm2407, %v2376, %v2406
    %vm2409 = vcmask 1047559
    %v2410 = vsel %vm2409, %v2377, %v2408
    %2412 = vmatprep.subr.mxu0 0.0
    %2413 = vmatpush1.xpose.msra.mxu0 %v2410
    %2414 = vmatprep.subr.mxu0 0.0
    %2415 = vmatpush1.xpose.msra.mxu0 0.0
    %2416 = vmatprep.subr.mxu0 0.0
    %2417 = vmatpush1.xpose.msra.mxu0 0.0
    %2418 = vmatprep.subr.mxu0 0.0
    %2419 = vmatpush1.xpose.msra.mxu0 0.0
    %2420 = vmatprep.subr.mxu0 0.0
    %2421 = vmatpush1.xpose.msra.mxu0 0.0
    %2422 = vmatprep.subr.mxu0 0.0
    %2423 = vmatpush1.xpose.msra.mxu0 0.0
    %2424 = vmatprep.subr.mxu0 0.0
    %2425 = vmatpush1.xpose.msra.mxu0 0.0
    %2426 = vmatprep.subr.mxu0 0.0
    %2427 = vmatpush1.xpose.msra.mxu0 0.0
    %2428 = vmatprep.subr.mxu0 0.0
    %2429 = vmatpush1.xpose.msra.mxu0 0.0
    %2430 = vmatprep.subr.mxu0 0.0
    %2431 = vmatpush1.xpose.msra.mxu0 0.0
    %2432 = vmatprep.subr.mxu0 0.0
    %2433 = vmatpush1.xpose.msra.mxu0 0.0
    %2434 = vmatprep.subr.mxu0 0.0
    %2435 = vmatpush1.xpose.msra.mxu0 0.0
    %2436 = vmatprep.subr.mxu0 0.0
    %2437 = vmatpush1.xpose.msra.mxu0 0.0
    %2438 = vmatprep.subr.mxu0 0.0
    %2439 = vmatpush1.xpose.msra.mxu0 0.0
    %2440 = vmatprep.subr.mxu0 0.0
    %2441 = vmatpush1.xpose.msra.mxu0 0.0
    %2442 = vmatprep.subr.mxu0 0.0
    %2443 = vmatpush1.xpose.msra.mxu0 0.0
    %2444 = vmatprep.subr.mxu0 0.0
    %2445 = vmatpush1.xpose.msra.mxu0 0.0
    %2446 = vmatprep.subr.mxu0 0.0
    %2447 = vmatpush1.xpose.msra.mxu0 0.0
    %2448 = vmatprep.subr.mxu0 0.0
    %2449 = vmatpush1.xpose.msra.mxu0 0.0
    %2450 = vmatprep.subr.mxu0 0.0
    %2451 = vmatpush1.xpose.msra.mxu0 0.0
    %2452 = vmatprep.subr.mxu0 0.0
    %2453 = vmatpush1.xpose.msra.mxu0 0.0
    %2454 = vmatprep.subr.mxu0 0.0
    %2455 = vmatpush1.xpose.msra.mxu0 0.0
    %2456 = vmatprep.subr.mxu0 0.0
    %2457 = vmatpush1.xpose.msra.mxu0 0.0
    %2458 = vmatprep.subr.mxu0 0.0
    %2459 = vmatpush1.xpose.msra.mxu0 0.0
    %2460 = vmatprep.subr.mxu0 0.0
    %2461 = vmatpush1.xpose.msra.mxu0 0.0
    %2462 = vmatprep.subr.mxu0 0.0
    %2463 = vmatpush1.xpose.msra.mxu0 0.0
    %2464 = vmatprep.subr.mxu0 0.0
    %2465 = vmatpush1.xpose.msra.mxu0 0.0
    %2466 = vmatprep.subr.mxu0 0.0
    %2467 = vmatpush1.xpose.msra.mxu0 0.0
    %2468 = vmatprep.subr.mxu0 0.0
    %2469 = vmatpush1.xpose.msra.mxu0 0.0
    %2470 = vmatprep.subr.mxu0 0.0
    %2471 = vmatpush1.xpose.msra.mxu0 0.0
    %2472 = vmatprep.subr.mxu0 0.0
    %2473 = vmatpush1.xpose.msra.mxu0 0.0
    %2474 = vmatprep.subr.mxu0 0.0
    %2475 = vmatpush1.xpose.msra.mxu0 0.0
    %2476 = vmatprep.mubr.f32.mxu0 0.0
    %2477 = vmatmul.mubr.f32.gmra.mrb[0].mxu0 %v2378
    %v2478 = vpop.f32.mrb[0].mxu0
    %v2479 = vadd.f32 %v2388, %v2478
    %v2480 = vpop.f32.mrb[0].mxu0
    %2481 = vdwg.mxu0
    %v2482 = vxor.u32 %v2479, 2147483648
    %v2483 = vmul.f32 %v2482, 1.442695
    %v2484 = vpow.pop %v2483
    %v2485 = vadd.f32 %v2484, 1.0
    %v2486 = vrcp.pop %v2485
    %v2487 = vmul.f32 1.0, %v2486
    %vm2488 = vcmask 57344
    %2489 = vst.msk [vmem:[%s9] sm:$0x1] %vm2488, %v2487
    // Predicated region
    $region42: #{circular_fcn_forward.1} parent=1 // pred_check
      _
    $region43: #{circular_fcn_forward.1} parent=1 // pred_check_branch
      %2491 = sbr.rel (0) target = $region45
    $region44: #{circular_fcn_forward.1} parent=1 // pred_region
      _
    $region45: #{circular_fcn_forward.1} parent=1 // pred_fallthru
      _
    // Predicated region
    $region46: #{circular_fcn_forward.1} parent=1 // pred_check
      _
    $region47: #{circular_fcn_forward.1} parent=1 // pred_check_branch
      %2493 = sbr.rel (0) target = $region49
    $region48: #{circular_fcn_forward.1} parent=1 // pred_region
      _
    $region49: #{circular_fcn_forward.1} parent=1 // pred_fallthru
      _
    %2494 = vsyncpa [#allocation4], 1

</llo_original>
